<compile_context>
chip_gen: v6e
topology: v6e:2x2x1
jax: 0.10.0
libtpu: 0.0.40
codegen_flags: <defaults>
</compile_context>

<pallas_src>
import functools

import jax
import jax.numpy as jnp
from jax.experimental import pallas as pl
from jax.experimental.pallas import tpu as pltpu


def _model_kernel(x_ref, wc_ref, bc_ref, msum_ref, wh_ref, bh_ref, out_ref,
                  *, img_w, rows):
    # x_ref:    (rows + pad, C)  flattened NHWC pixel rows for this batch tile
    # wc_ref:   (9, C, 64)       conv weight, tap-major (tap = kh*3 + kw)
    # bc_ref:   (1, 64)          conv bias
    # msum_ref: (nb, rows)       masked-average matrix (1/P on valid rows)
    # wh_ref:   (64, 128)        head weight, zero-padded to 128 lanes
    # bh_ref:   (1, 128)         head bias, zero-padded to 128 lanes
    # out_ref:  (nb, 128)        lane-dense logits tile for this grid step
    wc = wc_ref[...].astype(jnp.bfloat16)          # bf16 MXU inputs
    xb = x_ref[...].astype(jnp.bfloat16)           # single cast of the x tile
    acc = None
    for kh in range(3):
        for kw in range(3):
            off = kh * img_w + kw                  # flat row offset of this tap
            xs = xb[off:off + rows, :]             # (rows, C) shifted view
            u = jnp.dot(xs, wc[kh * 3 + kw],
                        preferred_element_type=jnp.float32)   # (rows, 64) f32
            acc = u if acc is None else acc + u
    conv = jnp.maximum(acc + bc_ref[...], 0.0)                 # ReLU(conv), f32
    # AdaptiveAvgPool2d((1,1)): masked mean over the valid output positions of
    # each image as one MXU matmul (invalid / padded rows have weight 0).
    pooled = jnp.dot(msum_ref[...], conv,
                     preferred_element_type=jnp.float32)       # (nb, 64)
    logits = jnp.dot(pooled, wh_ref[...],
                     preferred_element_type=jnp.float32) + bh_ref[...]
    out_ref[...] = logits.astype(out_ref.dtype)                # (nb, 128) store


def model_forward(x, w_conv, b_conv, w_head, b_head):
    """x: (N, 3, H, W) float32 NCHW -> (N, 10) float32 logits."""
    N, C, H, W = x.shape
    OH, OW = H - 2, W - 2
    P = OH * OW
    c_out = w_conv.shape[0]                         # 64
    n_cls = w_head.shape[0]                         # 10
    lanes = ((n_cls + 127) // 128) * 128            # lane-dense head width

    # Batch tiling: two "parallel" grid steps when possible (keeps both v7x
    # TensorCores busy; on v5e/v6e the extra tiny step is ~0.35us), else one.
    # TODO(synk): for large N, cap the tile at ~16-32 images/step and budget
    # double-buffered blocks against v7x's 64 MiB VMEM explicitly.
    n_steps = 2 if (N % 2 == 0 and N >= 2) else 1
    nb = N // n_steps
    rows = nb * H * W                               # flat pixel rows per step
    pad = ((2 * W + 2 + 7) // 8) * 8                # >= max tap offset, 8-aligned

    # Raw image NCHW -> flattened NHWC rows (same byte count as the input;
    # im2col itself happens inside the kernel), plus zero pad rows per step so
    # every shifted tap slice stays in bounds.
    x_rows = jnp.transpose(x, (0, 2, 3, 1)).reshape(n_steps, rows, C)
    x_rows = jnp.concatenate(
        [x_rows, jnp.zeros((n_steps, pad, C), x_rows.dtype)], axis=1)

    # Conv weight (O, C, kh, kw) -> (tap, C, O); bias -> (1, O).
    wc = jnp.transpose(w_conv, (2, 3, 1, 0)).reshape(9, C, c_out)
    bc = b_conv.reshape(1, c_out).astype(jnp.float32)

    # Masked-average matrix: row n averages the P valid (h'<OH, w'<OW)
    # full-resolution rows of image n (block-diagonal over the nb images).
    q = jnp.arange(H * W)
    valid = ((q // W) < OH) & ((q % W) < OW)
    msum_img = jnp.where(valid, 1.0 / P, 0.0).astype(jnp.float32)       # (H*W,)
    msum = jnp.kron(jnp.eye(nb, dtype=jnp.float32), msum_img[None, :])  # (nb, rows)

    # Head (10, 64) -> (64, 128) / (1, 128), zero-padded for lane-dense stores.
    wh = jnp.zeros((c_out, lanes), jnp.float32).at[:, :n_cls].set(w_head.T)
    bh = jnp.zeros((1, lanes), jnp.float32).at[:, :n_cls].set(b_head)

    kernel = functools.partial(_model_kernel, img_w=W, rows=rows)
    out = pl.pallas_call(
        kernel,
        out_shape=jax.ShapeDtypeStruct((n_steps, nb, lanes), jnp.float32),
        grid_spec=pltpu.PrefetchScalarGridSpec(
            num_scalar_prefetch=0,
            grid=(n_steps,),
            in_specs=[
                pl.BlockSpec((None, rows + pad, C), lambda g: (g, 0, 0)),
                pl.BlockSpec((9, C, c_out), lambda g: (0, 0, 0)),
                pl.BlockSpec((1, c_out), lambda g: (0, 0)),
                pl.BlockSpec((nb, rows), lambda g: (0, 0)),
                pl.BlockSpec((c_out, lanes), lambda g: (0, 0)),
                pl.BlockSpec((1, lanes), lambda g: (0, 0)),
            ],
            out_specs=pl.BlockSpec((None, nb, lanes), lambda g: (g, 0, 0)),
        ),
        compiler_params=pltpu.CompilerParams(
            dimension_semantics=("parallel",)),
    )(x_rows, wc, bc, msum, wh, bh)
    return out.reshape(N, lanes)[:, :n_cls]


def _reference_forward(x, w_conv, b_conv, w_head, b_head):
    # Plain-JAX (f32) reference of the PyTorch forward, for sanity checking.
    y = jax.lax.conv_general_dilated(
        x, w_conv, window_strides=(1, 1), padding="VALID",
        dimension_numbers=("NCHW", "OIHW", "NCHW"))
    y = y + b_conv.reshape(1, -1, 1, 1)
    y = jnp.maximum(y, 0.0)
    y = jnp.mean(y, axis=(2, 3))          # AdaptiveAvgPool2d((1,1)) + Flatten
    return y @ w_head.T + b_head


if __name__ == "__main__":
    key = jax.random.PRNGKey(0)
    k_x, k_wc, k_bc, k_wh, k_bh = jax.random.split(key, 5)

    # Shapes consistent with the module: batch=2, C_in=3 (Conv2d(3,64,3)), 16x16.
    N, C, H, W = 2, 3, 16, 16
    x = jax.random.normal(k_x, (N, C, H, W), dtype=jnp.float32)

    w_conv = jax.random.normal(k_wc, (64, 3, 3, 3), dtype=jnp.float32) * 0.1
    b_conv = jax.random.normal(k_bc, (64,), dtype=jnp.float32) * 0.1
    w_head = jax.random.normal(k_wh, (10, 64), dtype=jnp.float32) * 0.1
    b_head = jax.random.normal(k_bh, (10,), dtype=jnp.float32) * 0.1

    out = jax.jit(model_forward)(x, w_conv, b_conv, w_head, b_head)
    out = jax.block_until_ready(out)

    ref = _reference_forward(x, w_conv, b_conv, w_head, b_head)
    assert out.shape == (N, 10)
    # bf16 matmul inputs (f32 accumulation) vs. a pure-f32 reference.
    assert jnp.allclose(out, ref, atol=3e-2, rtol=3e-2), "mismatch vs reference"

    print("KERNEL_OK")
</pallas_src>

<mosaic_0001>
module attributes {stable_mosaic.version = 11 : i64} {
  func.func @_model_kernel(%arg0: i32, %arg1: memref<1x296x3xf32, #tpu.memory_space<vmem>>, %arg2: memref<9x3x64xf32, #tpu.memory_space<vmem>>, %arg3: memref<1x64xf32, #tpu.memory_space<vmem>>, %arg4: memref<1x256xf32, #tpu.memory_space<vmem>>, %arg5: memref<64x128xf32, #tpu.memory_space<vmem>>, %arg6: memref<1x128xf32, #tpu.memory_space<vmem>>, %arg7: memref<1x1x128xf32, #tpu.memory_space<vmem>>) attributes {dimension_semantics = [#tpu.dimension_semantics<parallel>], iteration_bounds = array<i64: 2>, scalar_prefetch = 0 : i64, scratch_operands = 0 : i64, tpu.core_type = #tpu.core_type<tc>, window_params = [{transform_indices = @transform_0, window_bounds = array<i64: 1, 296, 3>}, {pipeline_mode = #tpu.pipeline_mode<synchronous>, transform_indices = @transform_1, window_bounds = array<i64: 9, 3, 64>}, {pipeline_mode = #tpu.pipeline_mode<synchronous>, transform_indices = @transform_2, window_bounds = array<i64: 1, 64>}, {pipeline_mode = #tpu.pipeline_mode<synchronous>, transform_indices = @transform_3, window_bounds = array<i64: 1, 256>}, {pipeline_mode = #tpu.pipeline_mode<synchronous>, transform_indices = @transform_4, window_bounds = array<i64: 64, 128>}, {pipeline_mode = #tpu.pipeline_mode<synchronous>, transform_indices = @transform_5, window_bounds = array<i64: 1, 128>}, {transform_indices = @transform_6, window_bounds = array<i64: 1, 1, 128>}]} {
    %c0 = arith.constant 0 : index
    %c0_0 = arith.constant 0 : index
    %c0_1 = arith.constant 0 : index
    %0 = vector.load %arg2[%c0, %c0_0, %c0_1] : memref<9x3x64xf32, #tpu.memory_space<vmem>>, vector<9x3x64xf32>
    %1 = arith.truncf %0 : vector<9x3x64xf32> to vector<9x3x64xbf16>
    %c0_2 = arith.constant 0 : index
    %c0_3 = arith.constant 0 : index
    %c0_4 = arith.constant 0 : index
    %2 = vector.load %arg1[%c0_2, %c0_3, %c0_4] : memref<1x296x3xf32, #tpu.memory_space<vmem>>, vector<1x296x3xf32>
    %3 = vector.shape_cast %2 : vector<1x296x3xf32> to vector<296x3xf32>
    %4 = arith.truncf %3 : vector<296x3xf32> to vector<296x3xbf16>
    %5 = vector.extract_strided_slice %4 {offsets = [0, 0], sizes = [256, 3], strides = [1, 1]} : vector<296x3xbf16> to vector<256x3xbf16>
    %6 = vector.extract_strided_slice %1 {offsets = [0, 0, 0], sizes = [1, 3, 64], strides = [1, 1, 1]} : vector<9x3x64xbf16> to vector<1x3x64xbf16>
    %7 = vector.shape_cast %6 : vector<1x3x64xbf16> to vector<3x64xbf16>
    %cst = arith.constant dense<0.000000e+00> : vector<256x64xf32>
    %8 = tpu.matmul %5, %7, %cst {dimension_numbers = #tpu.dot_dimension_numbers<[1], [0], [0], [1], [0, 0, 1, 1], [], []>} : vector<256x3xbf16>, vector<3x64xbf16>, vector<256x64xf32> -> vector<256x64xf32>
    %9 = vector.extract_strided_slice %4 {offsets = [1, 0], sizes = [256, 3], strides = [1, 1]} : vector<296x3xbf16> to vector<256x3xbf16>
    %10 = vector.extract_strided_slice %1 {offsets = [1, 0, 0], sizes = [1, 3, 64], strides = [1, 1, 1]} : vector<9x3x64xbf16> to vector<1x3x64xbf16>
    %11 = vector.shape_cast %10 : vector<1x3x64xbf16> to vector<3x64xbf16>
    %cst_5 = arith.constant dense<0.000000e+00> : vector<256x64xf32>
    %12 = tpu.matmul %9, %11, %cst_5 {dimension_numbers = #tpu.dot_dimension_numbers<[1], [0], [0], [1], [0, 0, 1, 1], [], []>} : vector<256x3xbf16>, vector<3x64xbf16>, vector<256x64xf32> -> vector<256x64xf32>
    %13 = arith.addf %8, %12 : vector<256x64xf32>
    %14 = vector.extract_strided_slice %4 {offsets = [2, 0], sizes = [256, 3], strides = [1, 1]} : vector<296x3xbf16> to vector<256x3xbf16>
    %15 = vector.extract_strided_slice %1 {offsets = [2, 0, 0], sizes = [1, 3, 64], strides = [1, 1, 1]} : vector<9x3x64xbf16> to vector<1x3x64xbf16>
    %16 = vector.shape_cast %15 : vector<1x3x64xbf16> to vector<3x64xbf16>
    %cst_6 = arith.constant dense<0.000000e+00> : vector<256x64xf32>
    %17 = tpu.matmul %14, %16, %cst_6 {dimension_numbers = #tpu.dot_dimension_numbers<[1], [0], [0], [1], [0, 0, 1, 1], [], []>} : vector<256x3xbf16>, vector<3x64xbf16>, vector<256x64xf32> -> vector<256x64xf32>
    %18 = arith.addf %13, %17 : vector<256x64xf32>
    %19 = vector.extract_strided_slice %4 {offsets = [16, 0], sizes = [256, 3], strides = [1, 1]} : vector<296x3xbf16> to vector<256x3xbf16>
    %20 = vector.extract_strided_slice %1 {offsets = [3, 0, 0], sizes = [1, 3, 64], strides = [1, 1, 1]} : vector<9x3x64xbf16> to vector<1x3x64xbf16>
    %21 = vector.shape_cast %20 : vector<1x3x64xbf16> to vector<3x64xbf16>
    %cst_7 = arith.constant dense<0.000000e+00> : vector<256x64xf32>
    %22 = tpu.matmul %19, %21, %cst_7 {dimension_numbers = #tpu.dot_dimension_numbers<[1], [0], [0], [1], [0, 0, 1, 1], [], []>} : vector<256x3xbf16>, vector<3x64xbf16>, vector<256x64xf32> -> vector<256x64xf32>
    %23 = arith.addf %18, %22 : vector<256x64xf32>
    %24 = vector.extract_strided_slice %4 {offsets = [17, 0], sizes = [256, 3], strides = [1, 1]} : vector<296x3xbf16> to vector<256x3xbf16>
    %25 = vector.extract_strided_slice %1 {offsets = [4, 0, 0], sizes = [1, 3, 64], strides = [1, 1, 1]} : vector<9x3x64xbf16> to vector<1x3x64xbf16>
    %26 = vector.shape_cast %25 : vector<1x3x64xbf16> to vector<3x64xbf16>
    %cst_8 = arith.constant dense<0.000000e+00> : vector<256x64xf32>
    %27 = tpu.matmul %24, %26, %cst_8 {dimension_numbers = #tpu.dot_dimension_numbers<[1], [0], [0], [1], [0, 0, 1, 1], [], []>} : vector<256x3xbf16>, vector<3x64xbf16>, vector<256x64xf32> -> vector<256x64xf32>
    %28 = arith.addf %23, %27 : vector<256x64xf32>
    %29 = vector.extract_strided_slice %4 {offsets = [18, 0], sizes = [256, 3], strides = [1, 1]} : vector<296x3xbf16> to vector<256x3xbf16>
    %30 = vector.extract_strided_slice %1 {offsets = [5, 0, 0], sizes = [1, 3, 64], strides = [1, 1, 1]} : vector<9x3x64xbf16> to vector<1x3x64xbf16>
    %31 = vector.shape_cast %30 : vector<1x3x64xbf16> to vector<3x64xbf16>
    %cst_9 = arith.constant dense<0.000000e+00> : vector<256x64xf32>
    %32 = tpu.matmul %29, %31, %cst_9 {dimension_numbers = #tpu.dot_dimension_numbers<[1], [0], [0], [1], [0, 0, 1, 1], [], []>} : vector<256x3xbf16>, vector<3x64xbf16>, vector<256x64xf32> -> vector<256x64xf32>
    %33 = arith.addf %28, %32 : vector<256x64xf32>
    %34 = vector.extract_strided_slice %4 {offsets = [32, 0], sizes = [256, 3], strides = [1, 1]} : vector<296x3xbf16> to vector<256x3xbf16>
    %35 = vector.extract_strided_slice %1 {offsets = [6, 0, 0], sizes = [1, 3, 64], strides = [1, 1, 1]} : vector<9x3x64xbf16> to vector<1x3x64xbf16>
    %36 = vector.shape_cast %35 : vector<1x3x64xbf16> to vector<3x64xbf16>
    %cst_10 = arith.constant dense<0.000000e+00> : vector<256x64xf32>
    %37 = tpu.matmul %34, %36, %cst_10 {dimension_numbers = #tpu.dot_dimension_numbers<[1], [0], [0], [1], [0, 0, 1, 1], [], []>} : vector<256x3xbf16>, vector<3x64xbf16>, vector<256x64xf32> -> vector<256x64xf32>
    %38 = arith.addf %33, %37 : vector<256x64xf32>
    %39 = vector.extract_strided_slice %4 {offsets = [33, 0], sizes = [256, 3], strides = [1, 1]} : vector<296x3xbf16> to vector<256x3xbf16>
    %40 = vector.extract_strided_slice %1 {offsets = [7, 0, 0], sizes = [1, 3, 64], strides = [1, 1, 1]} : vector<9x3x64xbf16> to vector<1x3x64xbf16>
    %41 = vector.shape_cast %40 : vector<1x3x64xbf16> to vector<3x64xbf16>
    %cst_11 = arith.constant dense<0.000000e+00> : vector<256x64xf32>
    %42 = tpu.matmul %39, %41, %cst_11 {dimension_numbers = #tpu.dot_dimension_numbers<[1], [0], [0], [1], [0, 0, 1, 1], [], []>} : vector<256x3xbf16>, vector<3x64xbf16>, vector<256x64xf32> -> vector<256x64xf32>
    %43 = arith.addf %38, %42 : vector<256x64xf32>
    %44 = vector.extract_strided_slice %4 {offsets = [34, 0], sizes = [256, 3], strides = [1, 1]} : vector<296x3xbf16> to vector<256x3xbf16>
    %45 = vector.extract_strided_slice %1 {offsets = [8, 0, 0], sizes = [1, 3, 64], strides = [1, 1, 1]} : vector<9x3x64xbf16> to vector<1x3x64xbf16>
    %46 = vector.shape_cast %45 : vector<1x3x64xbf16> to vector<3x64xbf16>
    %cst_12 = arith.constant dense<0.000000e+00> : vector<256x64xf32>
    %47 = tpu.matmul %44, %46, %cst_12 {dimension_numbers = #tpu.dot_dimension_numbers<[1], [0], [0], [1], [0, 0, 1, 1], [], []>} : vector<256x3xbf16>, vector<3x64xbf16>, vector<256x64xf32> -> vector<256x64xf32>
    %48 = arith.addf %43, %47 : vector<256x64xf32>
    %c0_13 = arith.constant 0 : index
    %c0_14 = arith.constant 0 : index
    %49 = vector.load %arg3[%c0_13, %c0_14] : memref<1x64xf32, #tpu.memory_space<vmem>>, vector<1x64xf32>
    %50 = vector.broadcast %49 : vector<1x64xf32> to vector<256x64xf32>
    %51 = arith.addf %48, %50 : vector<256x64xf32>
    %cst_15 = arith.constant 0.000000e+00 : f32
    %52 = vector.broadcast %cst_15 : f32 to vector<256x64xf32>
    %53 = arith.maximumf %51, %52 : vector<256x64xf32>
    %c0_16 = arith.constant 0 : index
    %c0_17 = arith.constant 0 : index
    %54 = vector.load %arg4[%c0_16, %c0_17] : memref<1x256xf32, #tpu.memory_space<vmem>>, vector<1x256xf32>
    %cst_18 = arith.constant dense<0.000000e+00> : vector<1x64xf32>
    %55 = tpu.matmul %54, %53, %cst_18 {dimension_numbers = #tpu.dot_dimension_numbers<[1], [0], [0], [1], [0, 0, 1, 1], [], []>} : vector<1x256xf32>, vector<256x64xf32>, vector<1x64xf32> -> vector<1x64xf32>
    %c0_19 = arith.constant 0 : index
    %c0_20 = arith.constant 0 : index
    %56 = vector.load %arg5[%c0_19, %c0_20] : memref<64x128xf32, #tpu.memory_space<vmem>>, vector<64x128xf32>
    %cst_21 = arith.constant dense<0.000000e+00> : vector<1x128xf32>
    %57 = tpu.matmul %55, %56, %cst_21 {dimension_numbers = #tpu.dot_dimension_numbers<[1], [0], [0], [1], [0, 0, 1, 1], [], []>} : vector<1x64xf32>, vector<64x128xf32>, vector<1x128xf32> -> vector<1x128xf32>
    %c0_22 = arith.constant 0 : index
    %c0_23 = arith.constant 0 : index
    %58 = vector.load %arg6[%c0_22, %c0_23] : memref<1x128xf32, #tpu.memory_space<vmem>>, vector<1x128xf32>
    %59 = arith.addf %57, %58 : vector<1x128xf32>
    %c0_24 = arith.constant 0 : index
    %c0_25 = arith.constant 0 : index
    %c0_26 = arith.constant 0 : index
    %60 = vector.load %arg7[%c0_24, %c0_25, %c0_26] : memref<1x1x128xf32, #tpu.memory_space<vmem>>, vector<1x1x128xf32>
    %61 = vector.shape_cast %60 : vector<1x1x128xf32> to vector<1x128xf32>
    %62 = vector.shape_cast %59 : vector<1x128xf32> to vector<1x1x128xf32>
    tpu.vector_store %arg7[%c0_24, %c0_25, %c0_26], %62 {strides = array<i32>} : memref<1x1x128xf32, #tpu.memory_space<vmem>>, vector<1x1x128xf32>,
    return
  }
  func.func @transform_0(%arg0: i32) -> (i32, i32, i32) {
    %c0_i32 = arith.constant 0 : i32
    %c0_i32_0 = arith.constant 0 : i32
    %c0_i32_1 = arith.constant 0 : i32
    return %arg0, %c0_i32, %c0_i32_0 : i32, i32, i32
  }
  func.func @transform_1(%arg0: i32) -> (i32, i32, i32) {
    %c0_i32 = arith.constant 0 : i32
    %c0_i32_0 = arith.constant 0 : i32
    %c0_i32_1 = arith.constant 0 : i32
    %c0_i32_2 = arith.constant 0 : i32
    return %c0_i32, %c0_i32_0, %c0_i32_1 : i32, i32, i32
  }
  func.func @transform_2(%arg0: i32) -> (i32, i32) {
    %c0_i32 = arith.constant 0 : i32
    %c0_i32_0 = arith.constant 0 : i32
    %c0_i32_1 = arith.constant 0 : i32
    return %c0_i32, %c0_i32_0 : i32, i32
  }
  func.func @transform_3(%arg0: i32) -> (i32, i32) {
    %c0_i32 = arith.constant 0 : i32
    %c0_i32_0 = arith.constant 0 : i32
    %c0_i32_1 = arith.constant 0 : i32
    return %c0_i32, %c0_i32_0 : i32, i32
  }
  func.func @transform_4(%arg0: i32) -> (i32, i32) {
    %c0_i32 = arith.constant 0 : i32
    %c0_i32_0 = arith.constant 0 : i32
    %c0_i32_1 = arith.constant 0 : i32
    return %c0_i32, %c0_i32_0 : i32, i32
  }
  func.func @transform_5(%arg0: i32) -> (i32, i32) {
    %c0_i32 = arith.constant 0 : i32
    %c0_i32_0 = arith.constant 0 : i32
    %c0_i32_1 = arith.constant 0 : i32
    return %c0_i32, %c0_i32_0 : i32, i32
  }
  func.func @transform_6(%arg0: i32) -> (i32, i32, i32) {
    %c0_i32 = arith.constant 0 : i32
    %c0_i32_0 = arith.constant 0 : i32
    %c0_i32_1 = arith.constant 0 : i32
    return %arg0, %c0_i32, %c0_i32_0 : i32, i32, i32
  }
}

</mosaic_0001>

<llo_original>
// kernel: model_forward.1
$region0: #{model_forward.1}
  #allocation0 [shape = 'u32[]', space=smem, size = 0x4, offset = 0x4, fixed_abs, tag = 'smem constant byte address 0x4 - core index']
  #allocation1 [shape = 'u32[144,128]{1,0:T(1,128)}', space=vmem, size = 0x12000, scoped, tag = 'internal scratch']
  %s0 = inlined_call_operand.vmem [shape: f32[2,296,3], index: 0, kind: input, shape index: {}]
  %s1 = inlined_call_operand.vmem [shape: f32[9,3,64], index: 1, kind: input, shape index: {}]
  %s2 = inlined_call_operand.vmem [shape: f32[1,64], index: 2, kind: input, shape index: {}]
  %s3 = inlined_call_operand.vmem [shape: f32[1,256], index: 3, kind: input, shape index: {}]
  %s4 = inlined_call_operand.vmem [shape: f32[64,128], index: 4, kind: input, shape index: {}]
  %s5 = inlined_call_operand.vmem [shape: f32[1,128], index: 5, kind: input, shape index: {}]
  %s6 = inlined_call_operand.hbm [shape: f32[2,1,128], index: 6, kind: output, shape index: {}]
  %s7 = sld [smem:[#allocation0]]
  $region57: #{model_forward.1} parent=0
    _
  %s9 = ssub.s32 1, %s7
  %s10 = scalar_select 0, %s9, %s7
  $region1: #{model_forward.1} parent=0
    #allocation2 [shape = 'u8[1024]{0}', space=vmem, size = 0x400, scoped, tag = 'output window, operand 0']
    #allocation3 [shape = 's32[2]{0}', space=sflag, size = 0x8, scoped, tag = 'scoped memory for model_forward.1']
    %11 = vsyncpa [#allocation3], 0
    %s12 = scalar_lea.sflag [#allocation3], 1
    %13 = vsyncpa %s12, 0
    loop: start=0, step=1, limit=4
    $region2: #{model_forward.1} parent=1 // loop_pre_header
      _
    $region3: #{model_forward.1} parent=1 // loop_header
      %s15 = sphi 0, %s19
      %p16 = scmp.ge.s32.totalorder %s15, 4
      %s25 = sphi 0, %s27
      %s28 = sphi 0, %s25
      %s29 = sphi 0, %s28
      %s45 = sphi 0, %s29
      %s49 = sphi 0, %s49
      %s51 = sphi 0, %s49
      %s52 = sphi 0, %s51
      %s66 = sphi 0, %s52
      %s70 = sphi 0, %s70
      %s72 = sphi 0, %s70
      %s73 = sphi 0, %s72
      %s87 = sphi 0, %s73
      %s91 = sphi 0, %s91
      %s93 = sphi 0, %s91
      %s94 = sphi 0, %s93
      %s108 = sphi 0, %s94
      %s112 = sphi 0, %s112
      %s114 = sphi 0, %s112
      %s115 = sphi 0, %s114
      %s129 = sphi 0, %s115
      %s133 = sphi 0, %s133
      %s135 = sphi 0, %s133
      %s136 = sphi 0, %s135
      %s150 = sphi 0, %s136
      %s156 = sphi 0, %s158
      %s159 = sphi 0, %s156
      %s160 = sphi 0, %s159
      %s176 = sphi 0, %s160
    $region4: #{model_forward.1} parent=1 // loop_header_branch
      %18 = sbr.rel (%p16) target = $region8
    $region5: #{model_forward.1} parent=1 // loop_body
      %s20 = ssub.s32 %s15, 1
      %s21 = ssub.s32 %s15, 2
      %s22 = sadd.s32 %s15, 1
      %s23 = ssub.s32 %s15, %s22
      %p24 = scmp.eq.s32.totalorder %s23, 0
      %s26 = sadd.s32 %s25, 1
      %s27 = scalar_select %p24, %s25, %s26
      %p30 = pneg %p24
      %p31 = scmp.eq.s32.totalorder %s15, 1
      %p32 = por %p30, %p31
      %p33 = scmp.ne.s32.totalorder %s25, %s28
      %p34 = scmp.eq.s32.totalorder %s15, 0
      %p35 = por %p33, %p34
      %p36 = scmp.ne.s32.totalorder %s25, %s28
      %p37 = scmp.eq.s32.totalorder %s20, 1
      %p38 = por %p36, %p37
      %p39 = scmp.ne.s32.totalorder %s28, %s29
      %p40 = scmp.eq.s32.totalorder %s20, 0
      %p41 = por %p39, %p40
      %p42 = scmp.ne.s32.totalorder %s28, %s29
      %p43 = scmp.eq.s32.totalorder %s21, 1
      %p44 = por %p42, %p43
      %p46 = scmp.ne.s32.totalorder %s29, %s45
      %p47 = scmp.eq.s32.totalorder %s21, 0
      %p48 = por %p46, %p47
      %s50 = sadd.s32 %s49, 1
      %p53 = scmp.eq.s32.totalorder %s15, 1
      %p54 = scmp.ne.s32.totalorder %s49, %s51
      %p55 = scmp.eq.s32.totalorder %s15, 0
      %p56 = por %p54, %p55
      %p57 = scmp.ne.s32.totalorder %s49, %s51
      %p58 = scmp.eq.s32.totalorder %s20, 1
      %p59 = por %p57, %p58
      %p60 = scmp.ne.s32.totalorder %s51, %s52
      %p61 = scmp.eq.s32.totalorder %s20, 0
      %p62 = por %p60, %p61
      %p63 = scmp.ne.s32.totalorder %s51, %s52
      %p64 = scmp.eq.s32.totalorder %s21, 1
      %p65 = por %p63, %p64
      %p67 = scmp.ne.s32.totalorder %s52, %s66
      %p68 = scmp.eq.s32.totalorder %s21, 0
      %p69 = por %p67, %p68
      %s71 = sadd.s32 %s70, 1
      %p74 = scmp.eq.s32.totalorder %s15, 1
      %p75 = scmp.ne.s32.totalorder %s70, %s72
      %p76 = scmp.eq.s32.totalorder %s15, 0
      %p77 = por %p75, %p76
      %p78 = scmp.ne.s32.totalorder %s70, %s72
      %p79 = scmp.eq.s32.totalorder %s20, 1
      %p80 = por %p78, %p79
      %p81 = scmp.ne.s32.totalorder %s72, %s73
      %p82 = scmp.eq.s32.totalorder %s20, 0
      %p83 = por %p81, %p82
      %p84 = scmp.ne.s32.totalorder %s72, %s73
      %p85 = scmp.eq.s32.totalorder %s21, 1
      %p86 = por %p84, %p85
      %p88 = scmp.ne.s32.totalorder %s73, %s87
      %p89 = scmp.eq.s32.totalorder %s21, 0
      %p90 = por %p88, %p89
      %s92 = sadd.s32 %s91, 1
      %p95 = scmp.eq.s32.totalorder %s15, 1
      %p96 = scmp.ne.s32.totalorder %s91, %s93
      %p97 = scmp.eq.s32.totalorder %s15, 0
      %p98 = por %p96, %p97
      %p99 = scmp.ne.s32.totalorder %s91, %s93
      %p100 = scmp.eq.s32.totalorder %s20, 1
      %p101 = por %p99, %p100
      %p102 = scmp.ne.s32.totalorder %s93, %s94
      %p103 = scmp.eq.s32.totalorder %s20, 0
      %p104 = por %p102, %p103
      %p105 = scmp.ne.s32.totalorder %s93, %s94
      %p106 = scmp.eq.s32.totalorder %s21, 1
      %p107 = por %p105, %p106
      %p109 = scmp.ne.s32.totalorder %s94, %s108
      %p110 = scmp.eq.s32.totalorder %s21, 0
      %p111 = por %p109, %p110
      %s113 = sadd.s32 %s112, 1
      %p116 = scmp.eq.s32.totalorder %s15, 1
      %p117 = scmp.ne.s32.totalorder %s112, %s114
      %p118 = scmp.eq.s32.totalorder %s15, 0
      %p119 = por %p117, %p118
      %p120 = scmp.ne.s32.totalorder %s112, %s114
      %p121 = scmp.eq.s32.totalorder %s20, 1
      %p122 = por %p120, %p121
      %p123 = scmp.ne.s32.totalorder %s114, %s115
      %p124 = scmp.eq.s32.totalorder %s20, 0
      %p125 = por %p123, %p124
      %p126 = scmp.ne.s32.totalorder %s114, %s115
      %p127 = scmp.eq.s32.totalorder %s21, 1
      %p128 = por %p126, %p127
      %p130 = scmp.ne.s32.totalorder %s115, %s129
      %p131 = scmp.eq.s32.totalorder %s21, 0
      %p132 = por %p130, %p131
      %s134 = sadd.s32 %s133, 1
      %p137 = scmp.eq.s32.totalorder %s15, 1
      %p138 = scmp.ne.s32.totalorder %s133, %s135
      %p139 = scmp.eq.s32.totalorder %s15, 0
      %p140 = por %p138, %p139
      %p141 = scmp.ne.s32.totalorder %s133, %s135
      %p142 = scmp.eq.s32.totalorder %s20, 1
      %p143 = por %p141, %p142
      %p144 = scmp.ne.s32.totalorder %s135, %s136
      %p145 = scmp.eq.s32.totalorder %s20, 0
      %p146 = por %p144, %p145
      %p147 = scmp.ne.s32.totalorder %s135, %s136
      %p148 = scmp.eq.s32.totalorder %s21, 1
      %p149 = por %p147, %p148
      %p151 = scmp.ne.s32.totalorder %s136, %s150
      %p152 = scmp.eq.s32.totalorder %s21, 0
      %p153 = por %p151, %p152
      %s154 = ssub.s32 %s15, %s22
      %p155 = scmp.eq.s32.totalorder %s154, 0
      %s157 = sadd.s32 %s156, 1
      %s158 = scalar_select %p155, %s156, %s157
      %p161 = pneg %p155
      %p162 = scmp.eq.s32.totalorder %s15, 1
      %p163 = por %p161, %p162
      %p164 = scmp.ne.s32.totalorder %s156, %s159
      %p165 = scmp.eq.s32.totalorder %s15, 0
      %p166 = por %p164, %p165
      %p167 = scmp.ne.s32.totalorder %s156, %s159
      %p168 = scmp.eq.s32.totalorder %s20, 1
      %p169 = por %p167, %p168
      %p170 = scmp.ne.s32.totalorder %s159, %s160
      %p171 = scmp.eq.s32.totalorder %s20, 0
      %p172 = por %p170, %p171
      %p173 = scmp.ne.s32.totalorder %s159, %s160
      %p174 = scmp.eq.s32.totalorder %s21, 1
      %p175 = por %p173, %p174
      %p177 = scmp.ne.s32.totalorder %s160, %s176
      %p178 = scmp.eq.s32.totalorder %s21, 0
      %p179 = por %p177, %p178
      %p180 = scmp.le.s32.totalorder 1, %s15
      %p181 = scmp.lt.s32.totalorder %s15, 3
      %p182 = pnand %p180, %p181
      %p183 = pneg %p182
      // Predicated region
      $region9: #{model_forward.1} parent=5 // pred_check
        _
      $region10: #{model_forward.1} parent=5 // pred_check_branch
        %185 = sbr.rel (%p182) target = $region12
      $region11: #{model_forward.1} parent=5 // pred_region
        %s186 = ssub.s32 %s15, 1
        // Predicated region
        $region13: #{model_forward.1} parent=11 // pred_check
          %p187 = pneg %p62
        $region14: #{model_forward.1} parent=11 // pred_check_branch
          %189 = sbr.rel (%p187) target = $region16
        $region15: #{model_forward.1} parent=11 // pred_region
          _
        $region16: #{model_forward.1} parent=11 // pred_fallthru
          _
        // Predicated region
        $region17: #{model_forward.1} parent=11 // pred_check
          %p190 = pneg %p83
        $region18: #{model_forward.1} parent=11 // pred_check_branch
          %192 = sbr.rel (%p190) target = $region20
        $region19: #{model_forward.1} parent=11 // pred_region
          _
        $region20: #{model_forward.1} parent=11 // pred_fallthru
          _
        // Predicated region
        $region21: #{model_forward.1} parent=11 // pred_check
          %p193 = pneg %p104
        $region22: #{model_forward.1} parent=11 // pred_check_branch
          %195 = sbr.rel (%p193) target = $region24
        $region23: #{model_forward.1} parent=11 // pred_region
          _
        $region24: #{model_forward.1} parent=11 // pred_fallthru
          _
        // Predicated region
        $region25: #{model_forward.1} parent=11 // pred_check
          %p196 = pneg %p125
        $region26: #{model_forward.1} parent=11 // pred_check_branch
          %198 = sbr.rel (%p196) target = $region28
        $region27: #{model_forward.1} parent=11 // pred_region
          _
        $region28: #{model_forward.1} parent=11 // pred_fallthru
          _
        // Predicated region
        $region29: #{model_forward.1} parent=11 // pred_check
          %p199 = pneg %p146
        $region30: #{model_forward.1} parent=11 // pred_check_branch
          %201 = sbr.rel (%p199) target = $region32
        $region31: #{model_forward.1} parent=11 // pred_region
          _
        $region32: #{model_forward.1} parent=11 // pred_fallthru
          _
      $region12: #{model_forward.1} parent=5 // pred_fallthru
        _
      %p202 = scmp.lt.s32.totalorder %s15, 2
      // Predicated region
      $region33: #{model_forward.1} parent=5 // pred_check
        %p203 = pneg %p202
      $region34: #{model_forward.1} parent=5 // pred_check_branch
        %205 = sbr.rel (%p203) target = $region36
      $region35: #{model_forward.1} parent=5 // pred_region
        // Predicated region
        $region37: #{model_forward.1} parent=35 // pred_check
          %p206 = pneg %p35
        $region38: #{model_forward.1} parent=35 // pred_check_branch
          %208 = sbr.rel (%p206) target = $region40
        $region39: #{model_forward.1} parent=35 // pred_region
          %p209 = scmp.lt.s32.totalorder %s15, 1
          %s210 = scalar_select %p209, %s15, 1
          %s211 = smul.addr %s210, 37
          %s212 = smul.addr %s211, 8
          %s213 = scalar_lea.vmem %s0, %s212
        $region40: #{model_forward.1} parent=35 // pred_fallthru
          _
      $region36: #{model_forward.1} parent=5 // pred_fallthru
        _
      %p214 = scmp.le.s32.totalorder 1, %s15
      %p215 = scmp.lt.s32.totalorder %s15, 3
      %p216 = pnand %p214, %p215
      %p217 = pneg %p216
      // Predicated region
      $region41: #{model_forward.1} parent=5 // pred_check
        _
      $region42: #{model_forward.1} parent=5 // pred_check_branch
        %219 = sbr.rel (%p216) target = $region44
      $region43: #{model_forward.1} parent=5 // pred_region
        %s220 = ssub.s32 %s15, 1
        %p221 = scmp.lt.s32.totalorder %s20, 1
        %s222 = scalar_select %p221, %s20, 1
        %s223 = smul.addr %s222, 37
        %s224 = smul.addr %s223, 8
        %s225 = scalar_lea.vmem %s0, %s224
        %p226 = pneg %p41
        %p227 = pneg %p38
        %p228 = pneg %p62
        %p229 = pneg %p59
        %p230 = pneg %p83
        %p231 = pneg %p80
        %p232 = pneg %p104
        %p233 = pneg %p101
        %p234 = pneg %p125
        %p235 = pneg %p122
        %p236 = pneg %p146
        %p237 = pneg %p143
        %p238 = pneg %p172
        %p239 = pneg %p169
        %s240 = sand.u32 %s159, 1
        %s241 = scalar_lea.sflag [#allocation3], %s240
        %s242 = sand.u32 %s159, 1
        %s243 = scalar_lea.vmem [#allocation2], %s242
        %p244 = scmp.lt.s32.totalorder %s20, 1
        %s245 = scalar_select %p244, %s20, 1
        %s246 = smul.addr %s245, 37
        %s247 = smul.addr %s246, 8
        %s248 = scalar_lea.vmem %s0, %s247
        %v250 = vld [vmem:[%s1] sm:$0x7]
        %v251 = vld [vmem:[%s1 + $0x4] sm:$0x7]
        %v252 = vld [vmem:[%s1 + $0x8] sm:$0x7]
        %v253 = vld [vmem:[%s1 + $0xc] sm:$0x7]
        %v254 = vld [vmem:[%s1 + $0x10] sm:$0x7]
        %v255 = vld [vmem:[%s1 + $0x14] sm:$0x7]
        %v256 = vld [vmem:[%s1 + $0x18] sm:$0x7]
        %v257 = vld [vmem:[%s1 + $0x1c] sm:$0x7]
        %v258 = vld [vmem:[%s1 + $0x20] sm:$0x7]
        %v259 = vpack.c.bf16 %v250, %v250
        %v260 = vpack.c.bf16 %v251, %v251
        %v261 = vpack.c.bf16 %v252, %v252
        %v262 = vpack.c.bf16 %v253, %v253
        %v263 = vpack.c.bf16 %v254, %v254
        %v264 = vpack.c.bf16 %v255, %v255
        %v265 = vpack.c.bf16 %v256, %v256
        %v266 = vpack.c.bf16 %v257, %v257
        %v267 = vpack.c.bf16 %v258, %v258
        %v268 = vld [vmem:[%s248] sm:$0xff]
        %v269 = vld [vmem:[%s248 + $0x8] sm:$0xff]
        %v270 = vld [vmem:[%s248 + $0x10] sm:$0xff]
        %v271 = vld [vmem:[%s248 + $0x18] sm:$0xff]
        %v272 = vld [vmem:[%s248 + $0x20] sm:$0xff]
        %v273 = vld [vmem:[%s248 + $0x28] sm:$0xff]
        %v274 = vld [vmem:[%s248 + $0x30] sm:$0xff]
        %v275 = vld [vmem:[%s248 + $0x38] sm:$0xff]
        %v276 = vld [vmem:[%s248 + $0x40] sm:$0xff]
        %v277 = vld [vmem:[%s248 + $0x48] sm:$0xff]
        %v278 = vld [vmem:[%s248 + $0x50] sm:$0xff]
        %v279 = vld [vmem:[%s248 + $0x58] sm:$0xff]
        %v280 = vld [vmem:[%s248 + $0x60] sm:$0xff]
        %v281 = vld [vmem:[%s248 + $0x68] sm:$0xff]
        %v282 = vld [vmem:[%s248 + $0x70] sm:$0xff]
        %v283 = vld [vmem:[%s248 + $0x78] sm:$0xff]
        %v284 = vld [vmem:[%s248 + $0x80] sm:$0xff]
        %v285 = vld [vmem:[%s248 + $0x88] sm:$0xff]
        %v286 = vld [vmem:[%s248 + $0x90] sm:$0xff]
        %v287 = vld [vmem:[%s248 + $0x98] sm:$0xff]
        %v288 = vld [vmem:[%s248 + $0xa0] sm:$0xff]
        %v289 = vld [vmem:[%s248 + $0xa8] sm:$0xff]
        %v290 = vld [vmem:[%s248 + $0xb0] sm:$0xff]
        %v291 = vld [vmem:[%s248 + $0xb8] sm:$0xff]
        %v292 = vld [vmem:[%s248 + $0xc0] sm:$0xff]
        %v293 = vld [vmem:[%s248 + $0xc8] sm:$0xff]
        %v294 = vld [vmem:[%s248 + $0xd0] sm:$0xff]
        %v295 = vld [vmem:[%s248 + $0xd8] sm:$0xff]
        %v296 = vld [vmem:[%s248 + $0xe0] sm:$0xff]
        %v297 = vld [vmem:[%s248 + $0xe8] sm:$0xff]
        %v298 = vld [vmem:[%s248 + $0xf0] sm:$0xff]
        %v299 = vld [vmem:[%s248 + $0xf8] sm:$0xff]
        %v300 = vld [vmem:[%s248 + $0x100] sm:$0xff]
        %v301 = vld [vmem:[%s248 + $0x108] sm:$0xff]
        %v302 = vld [vmem:[%s248 + $0x110] sm:$0xff]
        %v303 = vld [vmem:[%s248 + $0x118] sm:$0xff]
        %v304 = vld [vmem:[%s248 + $0x120] sm:$0xff]
        %v305 = vpack.c.bf16 %v269, %v268
        %v306 = vpack.c.bf16 %v271, %v270
        %v307 = vpack.c.bf16 %v273, %v272
        %v308 = vpack.c.bf16 %v275, %v274
        %v309 = vpack.c.bf16 %v277, %v276
        %v310 = vpack.c.bf16 %v279, %v278
        %v311 = vpack.c.bf16 %v281, %v280
        %v312 = vpack.c.bf16 %v283, %v282
        %v313 = vpack.c.bf16 %v285, %v284
        %v314 = vpack.c.bf16 %v287, %v286
        %v315 = vpack.c.bf16 %v289, %v288
        %v316 = vpack.c.bf16 %v291, %v290
        %v317 = vpack.c.bf16 %v293, %v292
        %v318 = vpack.c.bf16 %v295, %v294
        %v319 = vpack.c.bf16 %v297, %v296
        %v320 = vpack.c.bf16 %v299, %v298
        %v321 = vpack.c.bf16 %v301, %v300
        %v322 = vpack.c.bf16 %v303, %v302
        %v323 = vpack.c.bf16 %v304, %v304
        %vm324 = vsmask.f32 7424
        %v326 = vshrl.u32 %v305, 16
        %v328 = vshll.u32 %v305, 16
        %v330 = vrot.slane %v328, 1
        %v331 = vor.u32 %v326, %v330
        %v333 = vshll.u32 %v306, 16
        %v335 = vrot.slane %v333, 1
        %v336 = vsel %vm324, %v331, %v335
        %v337 = vshrl.u32 %v306, 16
        %v339 = vor.u32 %v337, %v335
        %v341 = vshll.u32 %v307, 16
        %v343 = vrot.slane %v341, 1
        %v344 = vsel %vm324, %v339, %v343
        %v345 = vshrl.u32 %v307, 16
        %v347 = vor.u32 %v345, %v343
        %v349 = vshll.u32 %v308, 16
        %v351 = vrot.slane %v349, 1
        %v352 = vsel %vm324, %v347, %v351
        %v353 = vshrl.u32 %v308, 16
        %v355 = vor.u32 %v353, %v351
        %v357 = vshll.u32 %v309, 16
        %v359 = vrot.slane %v357, 1
        %v360 = vsel %vm324, %v355, %v359
        %v361 = vshrl.u32 %v309, 16
        %v363 = vor.u32 %v361, %v359
        %v365 = vshll.u32 %v310, 16
        %v367 = vrot.slane %v365, 1
        %v368 = vsel %vm324, %v363, %v367
        %v369 = vshrl.u32 %v310, 16
        %v371 = vor.u32 %v369, %v367
        %v373 = vshll.u32 %v311, 16
        %v375 = vrot.slane %v373, 1
        %v376 = vsel %vm324, %v371, %v375
        %v377 = vshrl.u32 %v311, 16
        %v379 = vor.u32 %v377, %v375
        %v381 = vshll.u32 %v312, 16
        %v383 = vrot.slane %v381, 1
        %v384 = vsel %vm324, %v379, %v383
        %v385 = vshrl.u32 %v312, 16
        %v387 = vor.u32 %v385, %v383
        %v389 = vshll.u32 %v313, 16
        %v391 = vrot.slane %v389, 1
        %v392 = vsel %vm324, %v387, %v391
        %v393 = vshrl.u32 %v313, 16
        %v395 = vor.u32 %v393, %v391
        %v397 = vshll.u32 %v314, 16
        %v399 = vrot.slane %v397, 1
        %v400 = vsel %vm324, %v395, %v399
        %v401 = vshrl.u32 %v314, 16
        %v403 = vor.u32 %v401, %v399
        %v405 = vshll.u32 %v315, 16
        %v407 = vrot.slane %v405, 1
        %v408 = vsel %vm324, %v403, %v407
        %v409 = vshrl.u32 %v315, 16
        %v411 = vor.u32 %v409, %v407
        %v413 = vshll.u32 %v316, 16
        %v415 = vrot.slane %v413, 1
        %v416 = vsel %vm324, %v411, %v415
        %v417 = vshrl.u32 %v316, 16
        %v419 = vor.u32 %v417, %v415
        %v421 = vshll.u32 %v317, 16
        %v423 = vrot.slane %v421, 1
        %v424 = vsel %vm324, %v419, %v423
        %v425 = vshrl.u32 %v317, 16
        %v427 = vor.u32 %v425, %v423
        %v429 = vshll.u32 %v318, 16
        %v431 = vrot.slane %v429, 1
        %v432 = vsel %vm324, %v427, %v431
        %v433 = vshrl.u32 %v318, 16
        %v435 = vor.u32 %v433, %v431
        %v437 = vshll.u32 %v319, 16
        %v439 = vrot.slane %v437, 1
        %v440 = vsel %vm324, %v435, %v439
        %v441 = vshrl.u32 %v319, 16
        %v443 = vor.u32 %v441, %v439
        %v445 = vshll.u32 %v320, 16
        %v447 = vrot.slane %v445, 1
        %v448 = vsel %vm324, %v443, %v447
        %v449 = vshrl.u32 %v320, 16
        %v451 = vor.u32 %v449, %v447
        %v453 = vshll.u32 %v321, 16
        %v455 = vrot.slane %v453, 1
        %v456 = vsel %vm324, %v451, %v455
        %vm457 = vcmask 23552
        %v459 = vsel %vm457, %v336, 0
        %v462 = vsel %vm457, %v344, 0
        %v465 = vsel %vm457, %v352, 0
        %v468 = vsel %vm457, %v360, 0
        %v471 = vsel %vm457, %v368, 0
        %v474 = vsel %vm457, %v376, 0
        %v477 = vsel %vm457, %v384, 0
        %v480 = vsel %vm457, %v392, 0
        %v483 = vsel %vm457, %v400, 0
        %v486 = vsel %vm457, %v408, 0
        %v489 = vsel %vm457, %v416, 0
        %v492 = vsel %vm457, %v424, 0
        %v495 = vsel %vm457, %v432, 0
        %v498 = vsel %vm457, %v440, 0
        %v501 = vsel %vm457, %v448, 0
        %v504 = vsel %vm457, %v456, 0
        %vm506 = vcmask 1040384
        %vm507 = vcmask 1041408
        %v508 = vsel %vm506, 4294967295, 65535
        %v509 = vsel %vm507, %v508, 0
        %v511 = vand.u32 %v260, %v509
        %513 = vmatprep.subr.bf16.mxu0 0
        %514 = vmatpush1.bf16.msra.mxu0 0
        %515 = vmatprep.subr.bf16.mxu0 0
        %516 = vmatpush1.bf16.msra.mxu0 0
        %517 = vmatprep.subr.bf16.mxu0 0
        %518 = vmatpush1.bf16.msra.mxu0 0
        %519 = vmatprep.subr.bf16.mxu0 0
        %520 = vmatpush1.bf16.msra.mxu0 0
        %521 = vmatprep.subr.bf16.mxu0 0
        %522 = vmatpush1.bf16.msra.mxu0 0
        %523 = vmatprep.subr.bf16.mxu0 0
        %524 = vmatpush1.bf16.msra.mxu0 0
        %525 = vmatprep.subr.bf16.mxu0 0
        %526 = vmatpush1.bf16.msra.mxu0 0
        %527 = vmatprep.subr.bf16.mxu0 0
        %528 = vmatpush1.bf16.msra.mxu0 %v511
        %529 = vmatprep.subr.bf16.mxu0 0
        %530 = vmatpush2.bf16.msra.mxu0 0
        %531 = vmatprep.subr.bf16.mxu0 0
        %532 = vmatpush2.bf16.msra.mxu0 0
        %533 = vmatprep.subr.bf16.mxu0 0
        %534 = vmatpush2.bf16.msra.mxu0 0
        %535 = vmatprep.subr.bf16.mxu0 0
        %536 = vmatpush2.bf16.msra.mxu0 0
        %537 = vmatprep.subr.bf16.mxu0 0
        %538 = vmatpush2.bf16.msra.mxu0 0
        %539 = vmatprep.subr.bf16.mxu0 0
        %540 = vmatpush2.bf16.msra.mxu0 0
        %541 = vmatprep.subr.bf16.mxu0 0
        %542 = vmatpush2.bf16.msra.mxu0 0
        %543 = vmatprep.subr.bf16.mxu0 0
        %544 = vmatpush2.bf16.msra.mxu0 0
        %545 = vmatprep.mubr.bf16.mxu0 0
        %546 = vmatmul.mubr.bf16.gmra.mxu0 %v459
        %v547 = vpop.f32.mrf.mxu0
        %v548 = vadd.f32 0.0, %v547
        %v549 = vpop.f32.mrf.mxu0
        %v550 = vpop.f32.mrf.mxu0
        %v551 = vadd.f32 0.0, %v550
        %v552 = vpop.f32.mrf.mxu0
        %553 = vmatprep.mubr.bf16.mxu0 0
        %554 = vmatmul.mubr.bf16.gmra.mxu0 %v462
        %v555 = vpop.f32.mrf.mxu0
        %v556 = vadd.f32 0.0, %v555
        %v557 = vpop.f32.mrf.mxu0
        %v558 = vpop.f32.mrf.mxu0
        %v559 = vadd.f32 0.0, %v558
        %v560 = vpop.f32.mrf.mxu0
        %561 = vmatprep.mubr.bf16.mxu0 0
        %562 = vmatmul.mubr.bf16.gmra.mxu0 %v465
        %v563 = vpop.f32.mrf.mxu0
        %v564 = vadd.f32 0.0, %v563
        %v565 = vpop.f32.mrf.mxu0
        %v566 = vpop.f32.mrf.mxu0
        %v567 = vadd.f32 0.0, %v566
        %v568 = vpop.f32.mrf.mxu0
        %569 = vmatprep.mubr.bf16.mxu0 0
        %570 = vmatmul.mubr.bf16.gmra.mxu0 %v468
        %v571 = vpop.f32.mrf.mxu0
        %v572 = vadd.f32 0.0, %v571
        %v573 = vpop.f32.mrf.mxu0
        %v574 = vpop.f32.mrf.mxu0
        %v575 = vadd.f32 0.0, %v574
        %v576 = vpop.f32.mrf.mxu0
        %577 = vmatprep.mubr.bf16.mxu0 0
        %578 = vmatmul.mubr.bf16.gmra.mxu0 %v471
        %v579 = vpop.f32.mrf.mxu0
        %v580 = vadd.f32 0.0, %v579
        %v581 = vpop.f32.mrf.mxu0
        %v582 = vpop.f32.mrf.mxu0
        %v583 = vadd.f32 0.0, %v582
        %v584 = vpop.f32.mrf.mxu0
        %585 = vmatprep.mubr.bf16.mxu0 0
        %586 = vmatmul.mubr.bf16.gmra.mxu0 %v474
        %v587 = vpop.f32.mrf.mxu0
        %v588 = vadd.f32 0.0, %v587
        %v589 = vpop.f32.mrf.mxu0
        %v590 = vpop.f32.mrf.mxu0
        %v591 = vadd.f32 0.0, %v590
        %v592 = vpop.f32.mrf.mxu0
        %593 = vmatprep.mubr.bf16.mxu0 0
        %594 = vmatmul.mubr.bf16.gmra.mxu0 %v477
        %v595 = vpop.f32.mrf.mxu0
        %v596 = vadd.f32 0.0, %v595
        %v597 = vpop.f32.mrf.mxu0
        %v598 = vpop.f32.mrf.mxu0
        %v599 = vadd.f32 0.0, %v598
        %v600 = vpop.f32.mrf.mxu0
        %601 = vmatprep.mubr.bf16.mxu0 0
        %602 = vmatmul.mubr.bf16.gmra.mxu0 %v480
        %v603 = vpop.f32.mrf.mxu0
        %v604 = vadd.f32 0.0, %v603
        %v605 = vpop.f32.mrf.mxu0
        %v606 = vpop.f32.mrf.mxu0
        %v607 = vadd.f32 0.0, %v606
        %v608 = vpop.f32.mrf.mxu0
        %609 = vmatprep.mubr.bf16.mxu0 0
        %610 = vmatmul.mubr.bf16.gmra.mxu0 %v483
        %v611 = vpop.f32.mrf.mxu0
        %v612 = vadd.f32 0.0, %v611
        %v613 = vpop.f32.mrf.mxu0
        %v614 = vpop.f32.mrf.mxu0
        %v615 = vadd.f32 0.0, %v614
        %v616 = vpop.f32.mrf.mxu0
        %617 = vmatprep.mubr.bf16.mxu0 0
        %618 = vmatmul.mubr.bf16.gmra.mxu0 %v486
        %v619 = vpop.f32.mrf.mxu0
        %v620 = vadd.f32 0.0, %v619
        %v621 = vpop.f32.mrf.mxu0
        %v622 = vpop.f32.mrf.mxu0
        %v623 = vadd.f32 0.0, %v622
        %v624 = vpop.f32.mrf.mxu0
        %625 = vmatprep.mubr.bf16.mxu0 0
        %626 = vmatmul.mubr.bf16.gmra.mxu0 %v489
        %v627 = vpop.f32.mrf.mxu0
        %v628 = vadd.f32 0.0, %v627
        %v629 = vpop.f32.mrf.mxu0
        %v630 = vpop.f32.mrf.mxu0
        %v631 = vadd.f32 0.0, %v630
        %v632 = vpop.f32.mrf.mxu0
        %633 = vmatprep.mubr.bf16.mxu0 0
        %634 = vmatmul.mubr.bf16.gmra.mxu0 %v492
        %v635 = vpop.f32.mrf.mxu0
        %v636 = vadd.f32 0.0, %v635
        %v637 = vpop.f32.mrf.mxu0
        %v638 = vpop.f32.mrf.mxu0
        %v639 = vadd.f32 0.0, %v638
        %v640 = vpop.f32.mrf.mxu0
        %641 = vmatprep.mubr.bf16.mxu0 0
        %642 = vmatmul.mubr.bf16.gmra.mxu0 %v495
        %v643 = vpop.f32.mrf.mxu0
        %v644 = vadd.f32 0.0, %v643
        %v645 = vpop.f32.mrf.mxu0
        %v646 = vpop.f32.mrf.mxu0
        %v647 = vadd.f32 0.0, %v646
        %v648 = vpop.f32.mrf.mxu0
        %649 = vmatprep.mubr.bf16.mxu0 0
        %650 = vmatmul.mubr.bf16.gmra.mxu0 %v498
        %v651 = vpop.f32.mrf.mxu0
        %v652 = vadd.f32 0.0, %v651
        %v653 = vpop.f32.mrf.mxu0
        %v654 = vpop.f32.mrf.mxu0
        %v655 = vadd.f32 0.0, %v654
        %v656 = vpop.f32.mrf.mxu0
        %657 = vmatprep.mubr.bf16.mxu0 0
        %658 = vmatmul.mubr.bf16.gmra.mxu0 %v501
        %v659 = vpop.f32.mrf.mxu0
        %v660 = vadd.f32 0.0, %v659
        %v661 = vpop.f32.mrf.mxu0
        %v662 = vpop.f32.mrf.mxu0
        %v663 = vadd.f32 0.0, %v662
        %v664 = vpop.f32.mrf.mxu0
        %665 = vmatprep.mubr.bf16.mxu0 0
        %666 = vmatmul.mubr.bf16.gmra.mxu0 %v504
        %v667 = vpop.f32.mrf.mxu0
        %v668 = vadd.f32 0.0, %v667
        %v669 = vpop.f32.mrf.mxu0
        %v670 = vpop.f32.mrf.mxu0
        %v671 = vadd.f32 0.0, %v670
        %v672 = vpop.f32.mrf.mxu0
        %673 = vdwg.mxu0
        %v674 = vsel %vm457, %v305, 0
        %v676 = vsel %vm457, %v306, 0
        %v678 = vsel %vm457, %v307, 0
        %v680 = vsel %vm457, %v308, 0
        %v682 = vsel %vm457, %v309, 0
        %v684 = vsel %vm457, %v310, 0
        %v686 = vsel %vm457, %v311, 0
        %v688 = vsel %vm457, %v312, 0
        %v690 = vsel %vm457, %v313, 0
        %v692 = vsel %vm457, %v314, 0
        %v694 = vsel %vm457, %v315, 0
        %v696 = vsel %vm457, %v316, 0
        %v698 = vsel %vm457, %v317, 0
        %v700 = vsel %vm457, %v318, 0
        %v702 = vsel %vm457, %v319, 0
        %v704 = vsel %vm457, %v320, 0
        %v707 = vand.u32 %v259, %v509
        %709 = vmatprep.subr.bf16.mxu0 0
        %710 = vmatpush1.bf16.msra.mxu0 0
        %711 = vmatprep.subr.bf16.mxu0 0
        %712 = vmatpush1.bf16.msra.mxu0 0
        %713 = vmatprep.subr.bf16.mxu0 0
        %714 = vmatpush1.bf16.msra.mxu0 0
        %715 = vmatprep.subr.bf16.mxu0 0
        %716 = vmatpush1.bf16.msra.mxu0 0
        %717 = vmatprep.subr.bf16.mxu0 0
        %718 = vmatpush1.bf16.msra.mxu0 0
        %719 = vmatprep.subr.bf16.mxu0 0
        %720 = vmatpush1.bf16.msra.mxu0 0
        %721 = vmatprep.subr.bf16.mxu0 0
        %722 = vmatpush1.bf16.msra.mxu0 0
        %723 = vmatprep.subr.bf16.mxu0 0
        %724 = vmatpush1.bf16.msra.mxu0 %v707
        %725 = vmatprep.subr.bf16.mxu0 0
        %726 = vmatpush2.bf16.msra.mxu0 0
        %727 = vmatprep.subr.bf16.mxu0 0
        %728 = vmatpush2.bf16.msra.mxu0 0
        %729 = vmatprep.subr.bf16.mxu0 0
        %730 = vmatpush2.bf16.msra.mxu0 0
        %731 = vmatprep.subr.bf16.mxu0 0
        %732 = vmatpush2.bf16.msra.mxu0 0
        %733 = vmatprep.subr.bf16.mxu0 0
        %734 = vmatpush2.bf16.msra.mxu0 0
        %735 = vmatprep.subr.bf16.mxu0 0
        %736 = vmatpush2.bf16.msra.mxu0 0
        %737 = vmatprep.subr.bf16.mxu0 0
        %738 = vmatpush2.bf16.msra.mxu0 0
        %739 = vmatprep.subr.bf16.mxu0 0
        %740 = vmatpush2.bf16.msra.mxu0 0
        %741 = vmatprep.mubr.bf16.mxu0 0
        %742 = vmatmul.mubr.bf16.gmra.mxu0 %v674
        %v743 = vpop.f32.mrf.mxu0
        %v744 = vadd.f32 %v548, %v743
        %v745 = vpop.f32.mrf.mxu0
        %v746 = vpop.f32.mrf.mxu0
        %v747 = vadd.f32 %v551, %v746
        %v748 = vpop.f32.mrf.mxu0
        %749 = vmatprep.mubr.bf16.mxu0 0
        %750 = vmatmul.mubr.bf16.gmra.mxu0 %v676
        %v751 = vpop.f32.mrf.mxu0
        %v752 = vadd.f32 %v556, %v751
        %v753 = vpop.f32.mrf.mxu0
        %v754 = vpop.f32.mrf.mxu0
        %v755 = vadd.f32 %v559, %v754
        %v756 = vpop.f32.mrf.mxu0
        %757 = vmatprep.mubr.bf16.mxu0 0
        %758 = vmatmul.mubr.bf16.gmra.mxu0 %v678
        %v759 = vpop.f32.mrf.mxu0
        %v760 = vadd.f32 %v564, %v759
        %v761 = vpop.f32.mrf.mxu0
        %v762 = vpop.f32.mrf.mxu0
        %v763 = vadd.f32 %v567, %v762
        %v764 = vpop.f32.mrf.mxu0
        %765 = vmatprep.mubr.bf16.mxu0 0
        %766 = vmatmul.mubr.bf16.gmra.mxu0 %v680
        %v767 = vpop.f32.mrf.mxu0
        %v768 = vadd.f32 %v572, %v767
        %v769 = vpop.f32.mrf.mxu0
        %v770 = vpop.f32.mrf.mxu0
        %v771 = vadd.f32 %v575, %v770
        %v772 = vpop.f32.mrf.mxu0
        %773 = vmatprep.mubr.bf16.mxu0 0
        %774 = vmatmul.mubr.bf16.gmra.mxu0 %v682
        %v775 = vpop.f32.mrf.mxu0
        %v776 = vadd.f32 %v580, %v775
        %v777 = vpop.f32.mrf.mxu0
        %v778 = vpop.f32.mrf.mxu0
        %v779 = vadd.f32 %v583, %v778
        %v780 = vpop.f32.mrf.mxu0
        %781 = vmatprep.mubr.bf16.mxu0 0
        %782 = vmatmul.mubr.bf16.gmra.mxu0 %v684
        %v783 = vpop.f32.mrf.mxu0
        %v784 = vadd.f32 %v588, %v783
        %v785 = vpop.f32.mrf.mxu0
        %v786 = vpop.f32.mrf.mxu0
        %v787 = vadd.f32 %v591, %v786
        %v788 = vpop.f32.mrf.mxu0
        %789 = vmatprep.mubr.bf16.mxu0 0
        %790 = vmatmul.mubr.bf16.gmra.mxu0 %v686
        %v791 = vpop.f32.mrf.mxu0
        %v792 = vadd.f32 %v596, %v791
        %v793 = vpop.f32.mrf.mxu0
        %v794 = vpop.f32.mrf.mxu0
        %v795 = vadd.f32 %v599, %v794
        %v796 = vpop.f32.mrf.mxu0
        %797 = vmatprep.mubr.bf16.mxu0 0
        %798 = vmatmul.mubr.bf16.gmra.mxu0 %v688
        %v799 = vpop.f32.mrf.mxu0
        %v800 = vadd.f32 %v604, %v799
        %v801 = vpop.f32.mrf.mxu0
        %v802 = vpop.f32.mrf.mxu0
        %v803 = vadd.f32 %v607, %v802
        %v804 = vpop.f32.mrf.mxu0
        %805 = vmatprep.mubr.bf16.mxu0 0
        %806 = vmatmul.mubr.bf16.gmra.mxu0 %v690
        %v807 = vpop.f32.mrf.mxu0
        %v808 = vadd.f32 %v612, %v807
        %v809 = vpop.f32.mrf.mxu0
        %v810 = vpop.f32.mrf.mxu0
        %v811 = vadd.f32 %v615, %v810
        %v812 = vpop.f32.mrf.mxu0
        %813 = vmatprep.mubr.bf16.mxu0 0
        %814 = vmatmul.mubr.bf16.gmra.mxu0 %v692
        %v815 = vpop.f32.mrf.mxu0
        %v816 = vadd.f32 %v620, %v815
        %v817 = vpop.f32.mrf.mxu0
        %v818 = vpop.f32.mrf.mxu0
        %v819 = vadd.f32 %v623, %v818
        %v820 = vpop.f32.mrf.mxu0
        %821 = vmatprep.mubr.bf16.mxu0 0
        %822 = vmatmul.mubr.bf16.gmra.mxu0 %v694
        %v823 = vpop.f32.mrf.mxu0
        %v824 = vadd.f32 %v628, %v823
        %v825 = vpop.f32.mrf.mxu0
        %v826 = vpop.f32.mrf.mxu0
        %v827 = vadd.f32 %v631, %v826
        %v828 = vpop.f32.mrf.mxu0
        %829 = vmatprep.mubr.bf16.mxu0 0
        %830 = vmatmul.mubr.bf16.gmra.mxu0 %v696
        %v831 = vpop.f32.mrf.mxu0
        %v832 = vadd.f32 %v636, %v831
        %v833 = vpop.f32.mrf.mxu0
        %v834 = vpop.f32.mrf.mxu0
        %v835 = vadd.f32 %v639, %v834
        %v836 = vpop.f32.mrf.mxu0
        %837 = vmatprep.mubr.bf16.mxu0 0
        %838 = vmatmul.mubr.bf16.gmra.mxu0 %v698
        %v839 = vpop.f32.mrf.mxu0
        %v840 = vadd.f32 %v644, %v839
        %v841 = vpop.f32.mrf.mxu0
        %v842 = vpop.f32.mrf.mxu0
        %v843 = vadd.f32 %v647, %v842
        %v844 = vpop.f32.mrf.mxu0
        %845 = vmatprep.mubr.bf16.mxu0 0
        %846 = vmatmul.mubr.bf16.gmra.mxu0 %v700
        %v847 = vpop.f32.mrf.mxu0
        %v848 = vadd.f32 %v652, %v847
        %v849 = vpop.f32.mrf.mxu0
        %v850 = vpop.f32.mrf.mxu0
        %v851 = vadd.f32 %v655, %v850
        %v852 = vpop.f32.mrf.mxu0
        %853 = vmatprep.mubr.bf16.mxu0 0
        %854 = vmatmul.mubr.bf16.gmra.mxu0 %v702
        %v855 = vpop.f32.mrf.mxu0
        %v856 = vadd.f32 %v660, %v855
        %v857 = vpop.f32.mrf.mxu0
        %v858 = vpop.f32.mrf.mxu0
        %v859 = vadd.f32 %v663, %v858
        %v860 = vpop.f32.mrf.mxu0
        %861 = vmatprep.mubr.bf16.mxu0 0
        %862 = vmatmul.mubr.bf16.gmra.mxu0 %v704
        %v863 = vpop.f32.mrf.mxu0
        %v864 = vadd.f32 %v668, %v863
        %v865 = vpop.f32.mrf.mxu0
        %v866 = vpop.f32.mrf.mxu0
        %v867 = vadd.f32 %v671, %v866
        %v868 = vpop.f32.mrf.mxu0
        %869 = vdwg.mxu0
        %vm887 = vcmask 1046528
        %v888 = vrot.slane %v305, 1
        %v889 = vrot.slane %v306, 1
        %v890 = vsel %vm887, %v888, %v889
        %v891 = vrot.slane %v307, 1
        %v892 = vsel %vm887, %v889, %v891
        %v893 = vrot.slane %v308, 1
        %v894 = vsel %vm887, %v891, %v893
        %v895 = vrot.slane %v309, 1
        %v896 = vsel %vm887, %v893, %v895
        %v897 = vrot.slane %v310, 1
        %v898 = vsel %vm887, %v895, %v897
        %v899 = vrot.slane %v311, 1
        %v900 = vsel %vm887, %v897, %v899
        %v901 = vrot.slane %v312, 1
        %v902 = vsel %vm887, %v899, %v901
        %v903 = vrot.slane %v313, 1
        %v904 = vsel %vm887, %v901, %v903
        %v905 = vrot.slane %v314, 1
        %v906 = vsel %vm887, %v903, %v905
        %v907 = vrot.slane %v315, 1
        %v908 = vsel %vm887, %v905, %v907
        %v909 = vrot.slane %v316, 1
        %v910 = vsel %vm887, %v907, %v909
        %v911 = vrot.slane %v317, 1
        %v912 = vsel %vm887, %v909, %v911
        %v913 = vrot.slane %v318, 1
        %v914 = vsel %vm887, %v911, %v913
        %v915 = vrot.slane %v319, 1
        %v916 = vsel %vm887, %v913, %v915
        %v917 = vrot.slane %v320, 1
        %v918 = vsel %vm887, %v915, %v917
        %v919 = vrot.slane %v321, 1
        %v920 = vsel %vm887, %v917, %v919
        %v922 = vsel %vm457, %v890, 0
        %v925 = vsel %vm457, %v892, 0
        %v928 = vsel %vm457, %v894, 0
        %v931 = vsel %vm457, %v896, 0
        %v934 = vsel %vm457, %v898, 0
        %v937 = vsel %vm457, %v900, 0
        %v940 = vsel %vm457, %v902, 0
        %v943 = vsel %vm457, %v904, 0
        %v946 = vsel %vm457, %v906, 0
        %v949 = vsel %vm457, %v908, 0
        %v952 = vsel %vm457, %v910, 0
        %v955 = vsel %vm457, %v912, 0
        %v958 = vsel %vm457, %v914, 0
        %v961 = vsel %vm457, %v916, 0
        %v964 = vsel %vm457, %v918, 0
        %v967 = vsel %vm457, %v920, 0
        %v970 = vand.u32 %v261, %v509
        %972 = vmatprep.subr.bf16.mxu0 0
        %973 = vmatpush1.bf16.msra.mxu0 0
        %974 = vmatprep.subr.bf16.mxu0 0
        %975 = vmatpush1.bf16.msra.mxu0 0
        %976 = vmatprep.subr.bf16.mxu0 0
        %977 = vmatpush1.bf16.msra.mxu0 0
        %978 = vmatprep.subr.bf16.mxu0 0
        %979 = vmatpush1.bf16.msra.mxu0 0
        %980 = vmatprep.subr.bf16.mxu0 0
        %981 = vmatpush1.bf16.msra.mxu0 0
        %982 = vmatprep.subr.bf16.mxu0 0
        %983 = vmatpush1.bf16.msra.mxu0 0
        %984 = vmatprep.subr.bf16.mxu0 0
        %985 = vmatpush1.bf16.msra.mxu0 0
        %986 = vmatprep.subr.bf16.mxu0 0
        %987 = vmatpush1.bf16.msra.mxu0 %v970
        %988 = vmatprep.subr.bf16.mxu0 0
        %989 = vmatpush2.bf16.msra.mxu0 0
        %990 = vmatprep.subr.bf16.mxu0 0
        %991 = vmatpush2.bf16.msra.mxu0 0
        %992 = vmatprep.subr.bf16.mxu0 0
        %993 = vmatpush2.bf16.msra.mxu0 0
        %994 = vmatprep.subr.bf16.mxu0 0
        %995 = vmatpush2.bf16.msra.mxu0 0
        %996 = vmatprep.subr.bf16.mxu0 0
        %997 = vmatpush2.bf16.msra.mxu0 0
        %998 = vmatprep.subr.bf16.mxu0 0
        %999 = vmatpush2.bf16.msra.mxu0 0
        %1000 = vmatprep.subr.bf16.mxu0 0
        %1001 = vmatpush2.bf16.msra.mxu0 0
        %1002 = vmatprep.subr.bf16.mxu0 0
        %1003 = vmatpush2.bf16.msra.mxu0 0
        %1004 = vmatprep.mubr.bf16.mxu0 0
        %1005 = vmatmul.mubr.bf16.gmra.mxu0 %v922
        %v1006 = vpop.f32.mrf.mxu0
        %v1007 = vadd.f32 0.0, %v1006
        %v1008 = vpop.f32.mrf.mxu0
        %v1009 = vpop.f32.mrf.mxu0
        %v1010 = vadd.f32 0.0, %v1009
        %v1011 = vpop.f32.mrf.mxu0
        %1012 = vmatprep.mubr.bf16.mxu0 0
        %1013 = vmatmul.mubr.bf16.gmra.mxu0 %v925
        %v1014 = vpop.f32.mrf.mxu0
        %v1015 = vadd.f32 0.0, %v1014
        %v1016 = vpop.f32.mrf.mxu0
        %v1017 = vpop.f32.mrf.mxu0
        %v1018 = vadd.f32 0.0, %v1017
        %v1019 = vpop.f32.mrf.mxu0
        %1020 = vmatprep.mubr.bf16.mxu0 0
        %1021 = vmatmul.mubr.bf16.gmra.mxu0 %v928
        %v1022 = vpop.f32.mrf.mxu0
        %v1023 = vadd.f32 0.0, %v1022
        %v1024 = vpop.f32.mrf.mxu0
        %v1025 = vpop.f32.mrf.mxu0
        %v1026 = vadd.f32 0.0, %v1025
        %v1027 = vpop.f32.mrf.mxu0
        %1028 = vmatprep.mubr.bf16.mxu0 0
        %1029 = vmatmul.mubr.bf16.gmra.mxu0 %v931
        %v1030 = vpop.f32.mrf.mxu0
        %v1031 = vadd.f32 0.0, %v1030
        %v1032 = vpop.f32.mrf.mxu0
        %v1033 = vpop.f32.mrf.mxu0
        %v1034 = vadd.f32 0.0, %v1033
        %v1035 = vpop.f32.mrf.mxu0
        %1036 = vmatprep.mubr.bf16.mxu0 0
        %1037 = vmatmul.mubr.bf16.gmra.mxu0 %v934
        %v1038 = vpop.f32.mrf.mxu0
        %v1039 = vadd.f32 0.0, %v1038
        %v1040 = vpop.f32.mrf.mxu0
        %v1041 = vpop.f32.mrf.mxu0
        %v1042 = vadd.f32 0.0, %v1041
        %v1043 = vpop.f32.mrf.mxu0
        %1044 = vmatprep.mubr.bf16.mxu0 0
        %1045 = vmatmul.mubr.bf16.gmra.mxu0 %v937
        %v1046 = vpop.f32.mrf.mxu0
        %v1047 = vadd.f32 0.0, %v1046
        %v1048 = vpop.f32.mrf.mxu0
        %v1049 = vpop.f32.mrf.mxu0
        %v1050 = vadd.f32 0.0, %v1049
        %v1051 = vpop.f32.mrf.mxu0
        %1052 = vmatprep.mubr.bf16.mxu0 0
        %1053 = vmatmul.mubr.bf16.gmra.mxu0 %v940
        %v1054 = vpop.f32.mrf.mxu0
        %v1055 = vadd.f32 0.0, %v1054
        %v1056 = vpop.f32.mrf.mxu0
        %v1057 = vpop.f32.mrf.mxu0
        %v1058 = vadd.f32 0.0, %v1057
        %v1059 = vpop.f32.mrf.mxu0
        %1060 = vmatprep.mubr.bf16.mxu0 0
        %1061 = vmatmul.mubr.bf16.gmra.mxu0 %v943
        %v1062 = vpop.f32.mrf.mxu0
        %v1063 = vadd.f32 0.0, %v1062
        %v1064 = vpop.f32.mrf.mxu0
        %v1065 = vpop.f32.mrf.mxu0
        %v1066 = vadd.f32 0.0, %v1065
        %v1067 = vpop.f32.mrf.mxu0
        %1068 = vmatprep.mubr.bf16.mxu0 0
        %1069 = vmatmul.mubr.bf16.gmra.mxu0 %v946
        %v1070 = vpop.f32.mrf.mxu0
        %v1071 = vadd.f32 0.0, %v1070
        %v1072 = vpop.f32.mrf.mxu0
        %v1073 = vpop.f32.mrf.mxu0
        %v1074 = vadd.f32 0.0, %v1073
        %v1075 = vpop.f32.mrf.mxu0
        %1076 = vmatprep.mubr.bf16.mxu0 0
        %1077 = vmatmul.mubr.bf16.gmra.mxu0 %v949
        %v1078 = vpop.f32.mrf.mxu0
        %v1079 = vadd.f32 0.0, %v1078
        %v1080 = vpop.f32.mrf.mxu0
        %v1081 = vpop.f32.mrf.mxu0
        %v1082 = vadd.f32 0.0, %v1081
        %v1083 = vpop.f32.mrf.mxu0
        %1084 = vmatprep.mubr.bf16.mxu0 0
        %1085 = vmatmul.mubr.bf16.gmra.mxu0 %v952
        %v1086 = vpop.f32.mrf.mxu0
        %v1087 = vadd.f32 0.0, %v1086
        %v1088 = vpop.f32.mrf.mxu0
        %v1089 = vpop.f32.mrf.mxu0
        %v1090 = vadd.f32 0.0, %v1089
        %v1091 = vpop.f32.mrf.mxu0
        %1092 = vmatprep.mubr.bf16.mxu0 0
        %1093 = vmatmul.mubr.bf16.gmra.mxu0 %v955
        %v1094 = vpop.f32.mrf.mxu0
        %v1095 = vadd.f32 0.0, %v1094
        %v1096 = vpop.f32.mrf.mxu0
        %v1097 = vpop.f32.mrf.mxu0
        %v1098 = vadd.f32 0.0, %v1097
        %v1099 = vpop.f32.mrf.mxu0
        %1100 = vmatprep.mubr.bf16.mxu0 0
        %1101 = vmatmul.mubr.bf16.gmra.mxu0 %v958
        %v1102 = vpop.f32.mrf.mxu0
        %v1103 = vadd.f32 0.0, %v1102
        %v1104 = vpop.f32.mrf.mxu0
        %v1105 = vpop.f32.mrf.mxu0
        %v1106 = vadd.f32 0.0, %v1105
        %v1107 = vpop.f32.mrf.mxu0
        %1108 = vmatprep.mubr.bf16.mxu0 0
        %1109 = vmatmul.mubr.bf16.gmra.mxu0 %v961
        %v1110 = vpop.f32.mrf.mxu0
        %v1111 = vadd.f32 0.0, %v1110
        %v1112 = vpop.f32.mrf.mxu0
        %v1113 = vpop.f32.mrf.mxu0
        %v1114 = vadd.f32 0.0, %v1113
        %v1115 = vpop.f32.mrf.mxu0
        %1116 = vmatprep.mubr.bf16.mxu0 0
        %1117 = vmatmul.mubr.bf16.gmra.mxu0 %v964
        %v1118 = vpop.f32.mrf.mxu0
        %v1119 = vadd.f32 0.0, %v1118
        %v1120 = vpop.f32.mrf.mxu0
        %v1121 = vpop.f32.mrf.mxu0
        %v1122 = vadd.f32 0.0, %v1121
        %v1123 = vpop.f32.mrf.mxu0
        %1124 = vmatprep.mubr.bf16.mxu0 0
        %1125 = vmatmul.mubr.bf16.gmra.mxu0 %v967
        %v1126 = vpop.f32.mrf.mxu0
        %v1127 = vadd.f32 0.0, %v1126
        %v1128 = vpop.f32.mrf.mxu0
        %v1129 = vpop.f32.mrf.mxu0
        %v1130 = vadd.f32 0.0, %v1129
        %v1131 = vpop.f32.mrf.mxu0
        %1132 = vdwg.mxu0
        %v1133 = vadd.f32 %v744, %v1007
        %v1134 = vadd.f32 %v747, %v1010
        %v1135 = vadd.f32 %v752, %v1015
        %v1136 = vadd.f32 %v755, %v1018
        %v1137 = vadd.f32 %v760, %v1023
        %v1138 = vadd.f32 %v763, %v1026
        %v1139 = vadd.f32 %v768, %v1031
        %v1140 = vadd.f32 %v771, %v1034
        %v1141 = vadd.f32 %v776, %v1039
        %v1142 = vadd.f32 %v779, %v1042
        %v1143 = vadd.f32 %v784, %v1047
        %v1144 = vadd.f32 %v787, %v1050
        %v1145 = vadd.f32 %v792, %v1055
        %v1146 = vadd.f32 %v795, %v1058
        %v1147 = vadd.f32 %v800, %v1063
        %v1148 = vadd.f32 %v803, %v1066
        %v1149 = vadd.f32 %v808, %v1071
        %v1150 = vadd.f32 %v811, %v1074
        %v1151 = vadd.f32 %v816, %v1079
        %v1152 = vadd.f32 %v819, %v1082
        %v1153 = vadd.f32 %v824, %v1087
        %v1154 = vadd.f32 %v827, %v1090
        %v1155 = vadd.f32 %v832, %v1095
        %v1156 = vadd.f32 %v835, %v1098
        %v1157 = vadd.f32 %v840, %v1103
        %v1158 = vadd.f32 %v843, %v1106
        %v1159 = vadd.f32 %v848, %v1111
        %v1160 = vadd.f32 %v851, %v1114
        %v1161 = vadd.f32 %v856, %v1119
        %v1162 = vadd.f32 %v859, %v1122
        %v1163 = vadd.f32 %v864, %v1127
        %v1164 = vadd.f32 %v867, %v1130
        %v1165 = vsel %vm457, %v321, 0
        %v1168 = vand.u32 %v262, %v509
        %1170 = vmatprep.subr.bf16.mxu0 0
        %1171 = vmatpush1.bf16.msra.mxu0 0
        %1172 = vmatprep.subr.bf16.mxu0 0
        %1173 = vmatpush1.bf16.msra.mxu0 0
        %1174 = vmatprep.subr.bf16.mxu0 0
        %1175 = vmatpush1.bf16.msra.mxu0 0
        %1176 = vmatprep.subr.bf16.mxu0 0
        %1177 = vmatpush1.bf16.msra.mxu0 0
        %1178 = vmatprep.subr.bf16.mxu0 0
        %1179 = vmatpush1.bf16.msra.mxu0 0
        %1180 = vmatprep.subr.bf16.mxu0 0
        %1181 = vmatpush1.bf16.msra.mxu0 0
        %1182 = vmatprep.subr.bf16.mxu0 0
        %1183 = vmatpush1.bf16.msra.mxu0 0
        %1184 = vmatprep.subr.bf16.mxu0 0
        %1185 = vmatpush1.bf16.msra.mxu0 %v1168
        %1186 = vmatprep.subr.bf16.mxu0 0
        %1187 = vmatpush2.bf16.msra.mxu0 0
        %1188 = vmatprep.subr.bf16.mxu0 0
        %1189 = vmatpush2.bf16.msra.mxu0 0
        %1190 = vmatprep.subr.bf16.mxu0 0
        %1191 = vmatpush2.bf16.msra.mxu0 0
        %1192 = vmatprep.subr.bf16.mxu0 0
        %1193 = vmatpush2.bf16.msra.mxu0 0
        %1194 = vmatprep.subr.bf16.mxu0 0
        %1195 = vmatpush2.bf16.msra.mxu0 0
        %1196 = vmatprep.subr.bf16.mxu0 0
        %1197 = vmatpush2.bf16.msra.mxu0 0
        %1198 = vmatprep.subr.bf16.mxu0 0
        %1199 = vmatpush2.bf16.msra.mxu0 0
        %1200 = vmatprep.subr.bf16.mxu0 0
        %1201 = vmatpush2.bf16.msra.mxu0 0
        %1202 = vmatprep.mubr.bf16.mxu0 0
        %1203 = vmatmul.mubr.bf16.gmra.mxu0 %v676
        %v1204 = vpop.f32.mrf.mxu0
        %v1205 = vadd.f32 0.0, %v1204
        %v1206 = vpop.f32.mrf.mxu0
        %v1207 = vpop.f32.mrf.mxu0
        %v1208 = vadd.f32 0.0, %v1207
        %v1209 = vpop.f32.mrf.mxu0
        %1210 = vmatprep.mubr.bf16.mxu0 0
        %1211 = vmatmul.mubr.bf16.gmra.mxu0 %v678
        %v1212 = vpop.f32.mrf.mxu0
        %v1213 = vadd.f32 0.0, %v1212
        %v1214 = vpop.f32.mrf.mxu0
        %v1215 = vpop.f32.mrf.mxu0
        %v1216 = vadd.f32 0.0, %v1215
        %v1217 = vpop.f32.mrf.mxu0
        %1218 = vmatprep.mubr.bf16.mxu0 0
        %1219 = vmatmul.mubr.bf16.gmra.mxu0 %v680
        %v1220 = vpop.f32.mrf.mxu0
        %v1221 = vadd.f32 0.0, %v1220
        %v1222 = vpop.f32.mrf.mxu0
        %v1223 = vpop.f32.mrf.mxu0
        %v1224 = vadd.f32 0.0, %v1223
        %v1225 = vpop.f32.mrf.mxu0
        %1226 = vmatprep.mubr.bf16.mxu0 0
        %1227 = vmatmul.mubr.bf16.gmra.mxu0 %v682
        %v1228 = vpop.f32.mrf.mxu0
        %v1229 = vadd.f32 0.0, %v1228
        %v1230 = vpop.f32.mrf.mxu0
        %v1231 = vpop.f32.mrf.mxu0
        %v1232 = vadd.f32 0.0, %v1231
        %v1233 = vpop.f32.mrf.mxu0
        %1234 = vmatprep.mubr.bf16.mxu0 0
        %1235 = vmatmul.mubr.bf16.gmra.mxu0 %v684
        %v1236 = vpop.f32.mrf.mxu0
        %v1237 = vadd.f32 0.0, %v1236
        %v1238 = vpop.f32.mrf.mxu0
        %v1239 = vpop.f32.mrf.mxu0
        %v1240 = vadd.f32 0.0, %v1239
        %v1241 = vpop.f32.mrf.mxu0
        %1242 = vmatprep.mubr.bf16.mxu0 0
        %1243 = vmatmul.mubr.bf16.gmra.mxu0 %v686
        %v1244 = vpop.f32.mrf.mxu0
        %v1245 = vadd.f32 0.0, %v1244
        %v1246 = vpop.f32.mrf.mxu0
        %v1247 = vpop.f32.mrf.mxu0
        %v1248 = vadd.f32 0.0, %v1247
        %v1249 = vpop.f32.mrf.mxu0
        %1250 = vmatprep.mubr.bf16.mxu0 0
        %1251 = vmatmul.mubr.bf16.gmra.mxu0 %v688
        %v1252 = vpop.f32.mrf.mxu0
        %v1253 = vadd.f32 0.0, %v1252
        %v1254 = vpop.f32.mrf.mxu0
        %v1255 = vpop.f32.mrf.mxu0
        %v1256 = vadd.f32 0.0, %v1255
        %v1257 = vpop.f32.mrf.mxu0
        %1258 = vmatprep.mubr.bf16.mxu0 0
        %1259 = vmatmul.mubr.bf16.gmra.mxu0 %v690
        %v1260 = vpop.f32.mrf.mxu0
        %v1261 = vadd.f32 0.0, %v1260
        %v1262 = vpop.f32.mrf.mxu0
        %v1263 = vpop.f32.mrf.mxu0
        %v1264 = vadd.f32 0.0, %v1263
        %v1265 = vpop.f32.mrf.mxu0
        %1266 = vmatprep.mubr.bf16.mxu0 0
        %1267 = vmatmul.mubr.bf16.gmra.mxu0 %v692
        %v1268 = vpop.f32.mrf.mxu0
        %v1269 = vadd.f32 0.0, %v1268
        %v1270 = vpop.f32.mrf.mxu0
        %v1271 = vpop.f32.mrf.mxu0
        %v1272 = vadd.f32 0.0, %v1271
        %v1273 = vpop.f32.mrf.mxu0
        %1274 = vmatprep.mubr.bf16.mxu0 0
        %1275 = vmatmul.mubr.bf16.gmra.mxu0 %v694
        %v1276 = vpop.f32.mrf.mxu0
        %v1277 = vadd.f32 0.0, %v1276
        %v1278 = vpop.f32.mrf.mxu0
        %v1279 = vpop.f32.mrf.mxu0
        %v1280 = vadd.f32 0.0, %v1279
        %v1281 = vpop.f32.mrf.mxu0
        %1282 = vmatprep.mubr.bf16.mxu0 0
        %1283 = vmatmul.mubr.bf16.gmra.mxu0 %v696
        %v1284 = vpop.f32.mrf.mxu0
        %v1285 = vadd.f32 0.0, %v1284
        %v1286 = vpop.f32.mrf.mxu0
        %v1287 = vpop.f32.mrf.mxu0
        %v1288 = vadd.f32 0.0, %v1287
        %v1289 = vpop.f32.mrf.mxu0
        %1290 = vmatprep.mubr.bf16.mxu0 0
        %1291 = vmatmul.mubr.bf16.gmra.mxu0 %v698
        %v1292 = vpop.f32.mrf.mxu0
        %v1293 = vadd.f32 0.0, %v1292
        %v1294 = vpop.f32.mrf.mxu0
        %v1295 = vpop.f32.mrf.mxu0
        %v1296 = vadd.f32 0.0, %v1295
        %v1297 = vpop.f32.mrf.mxu0
        %1298 = vmatprep.mubr.bf16.mxu0 0
        %1299 = vmatmul.mubr.bf16.gmra.mxu0 %v700
        %v1300 = vpop.f32.mrf.mxu0
        %v1301 = vadd.f32 0.0, %v1300
        %v1302 = vpop.f32.mrf.mxu0
        %v1303 = vpop.f32.mrf.mxu0
        %v1304 = vadd.f32 0.0, %v1303
        %v1305 = vpop.f32.mrf.mxu0
        %1306 = vmatprep.mubr.bf16.mxu0 0
        %1307 = vmatmul.mubr.bf16.gmra.mxu0 %v702
        %v1308 = vpop.f32.mrf.mxu0
        %v1309 = vadd.f32 0.0, %v1308
        %v1310 = vpop.f32.mrf.mxu0
        %v1311 = vpop.f32.mrf.mxu0
        %v1312 = vadd.f32 0.0, %v1311
        %v1313 = vpop.f32.mrf.mxu0
        %1314 = vmatprep.mubr.bf16.mxu0 0
        %1315 = vmatmul.mubr.bf16.gmra.mxu0 %v704
        %v1316 = vpop.f32.mrf.mxu0
        %v1317 = vadd.f32 0.0, %v1316
        %v1318 = vpop.f32.mrf.mxu0
        %v1319 = vpop.f32.mrf.mxu0
        %v1320 = vadd.f32 0.0, %v1319
        %v1321 = vpop.f32.mrf.mxu0
        %1322 = vmatprep.mubr.bf16.mxu0 0
        %1323 = vmatmul.mubr.bf16.gmra.mxu0 %v1165
        %v1324 = vpop.f32.mrf.mxu0
        %v1325 = vadd.f32 0.0, %v1324
        %v1326 = vpop.f32.mrf.mxu0
        %v1327 = vpop.f32.mrf.mxu0
        %v1328 = vadd.f32 0.0, %v1327
        %v1329 = vpop.f32.mrf.mxu0
        %1330 = vdwg.mxu0
        %v1331 = vadd.f32 %v1133, %v1205
        %v1332 = vadd.f32 %v1134, %v1208
        %v1333 = vadd.f32 %v1135, %v1213
        %v1334 = vadd.f32 %v1136, %v1216
        %v1335 = vadd.f32 %v1137, %v1221
        %v1336 = vadd.f32 %v1138, %v1224
        %v1337 = vadd.f32 %v1139, %v1229
        %v1338 = vadd.f32 %v1140, %v1232
        %v1339 = vadd.f32 %v1141, %v1237
        %v1340 = vadd.f32 %v1142, %v1240
        %v1341 = vadd.f32 %v1143, %v1245
        %v1342 = vadd.f32 %v1144, %v1248
        %v1343 = vadd.f32 %v1145, %v1253
        %v1344 = vadd.f32 %v1146, %v1256
        %v1345 = vadd.f32 %v1147, %v1261
        %v1346 = vadd.f32 %v1148, %v1264
        %v1347 = vadd.f32 %v1149, %v1269
        %v1348 = vadd.f32 %v1150, %v1272
        %v1349 = vadd.f32 %v1151, %v1277
        %v1350 = vadd.f32 %v1152, %v1280
        %v1351 = vadd.f32 %v1153, %v1285
        %v1352 = vadd.f32 %v1154, %v1288
        %v1353 = vadd.f32 %v1155, %v1293
        %v1354 = vadd.f32 %v1156, %v1296
        %v1355 = vadd.f32 %v1157, %v1301
        %v1356 = vadd.f32 %v1158, %v1304
        %v1357 = vadd.f32 %v1159, %v1309
        %v1358 = vadd.f32 %v1160, %v1312
        %v1359 = vadd.f32 %v1161, %v1317
        %v1360 = vadd.f32 %v1162, %v1320
        %v1361 = vadd.f32 %v1163, %v1325
        %v1362 = vadd.f32 %v1164, %v1328
        %v1363 = vshrl.u32 %v321, 16
        %v1365 = vor.u32 %v1363, %v455
        %v1367 = vshll.u32 %v322, 16
        %v1369 = vrot.slane %v1367, 1
        %v1370 = vsel %vm324, %v1365, %v1369
        %v1372 = vsel %vm457, %v1370, 0
        %v1375 = vand.u32 %v263, %v509
        %1377 = vmatprep.subr.bf16.mxu0 0
        %1378 = vmatpush1.bf16.msra.mxu0 0
        %1379 = vmatprep.subr.bf16.mxu0 0
        %1380 = vmatpush1.bf16.msra.mxu0 0
        %1381 = vmatprep.subr.bf16.mxu0 0
        %1382 = vmatpush1.bf16.msra.mxu0 0
        %1383 = vmatprep.subr.bf16.mxu0 0
        %1384 = vmatpush1.bf16.msra.mxu0 0
        %1385 = vmatprep.subr.bf16.mxu0 0
        %1386 = vmatpush1.bf16.msra.mxu0 0
        %1387 = vmatprep.subr.bf16.mxu0 0
        %1388 = vmatpush1.bf16.msra.mxu0 0
        %1389 = vmatprep.subr.bf16.mxu0 0
        %1390 = vmatpush1.bf16.msra.mxu0 0
        %1391 = vmatprep.subr.bf16.mxu0 0
        %1392 = vmatpush1.bf16.msra.mxu0 %v1375
        %1393 = vmatprep.subr.bf16.mxu0 0
        %1394 = vmatpush2.bf16.msra.mxu0 0
        %1395 = vmatprep.subr.bf16.mxu0 0
        %1396 = vmatpush2.bf16.msra.mxu0 0
        %1397 = vmatprep.subr.bf16.mxu0 0
        %1398 = vmatpush2.bf16.msra.mxu0 0
        %1399 = vmatprep.subr.bf16.mxu0 0
        %1400 = vmatpush2.bf16.msra.mxu0 0
        %1401 = vmatprep.subr.bf16.mxu0 0
        %1402 = vmatpush2.bf16.msra.mxu0 0
        %1403 = vmatprep.subr.bf16.mxu0 0
        %1404 = vmatpush2.bf16.msra.mxu0 0
        %1405 = vmatprep.subr.bf16.mxu0 0
        %1406 = vmatpush2.bf16.msra.mxu0 0
        %1407 = vmatprep.subr.bf16.mxu0 0
        %1408 = vmatpush2.bf16.msra.mxu0 0
        %1409 = vmatprep.mubr.bf16.mxu0 0
        %1410 = vmatmul.mubr.bf16.gmra.mxu0 %v462
        %v1411 = vpop.f32.mrf.mxu0
        %v1412 = vadd.f32 0.0, %v1411
        %v1413 = vpop.f32.mrf.mxu0
        %v1414 = vpop.f32.mrf.mxu0
        %v1415 = vadd.f32 0.0, %v1414
        %v1416 = vpop.f32.mrf.mxu0
        %1417 = vmatprep.mubr.bf16.mxu0 0
        %1418 = vmatmul.mubr.bf16.gmra.mxu0 %v465
        %v1419 = vpop.f32.mrf.mxu0
        %v1420 = vadd.f32 0.0, %v1419
        %v1421 = vpop.f32.mrf.mxu0
        %v1422 = vpop.f32.mrf.mxu0
        %v1423 = vadd.f32 0.0, %v1422
        %v1424 = vpop.f32.mrf.mxu0
        %1425 = vmatprep.mubr.bf16.mxu0 0
        %1426 = vmatmul.mubr.bf16.gmra.mxu0 %v468
        %v1427 = vpop.f32.mrf.mxu0
        %v1428 = vadd.f32 0.0, %v1427
        %v1429 = vpop.f32.mrf.mxu0
        %v1430 = vpop.f32.mrf.mxu0
        %v1431 = vadd.f32 0.0, %v1430
        %v1432 = vpop.f32.mrf.mxu0
        %1433 = vmatprep.mubr.bf16.mxu0 0
        %1434 = vmatmul.mubr.bf16.gmra.mxu0 %v471
        %v1435 = vpop.f32.mrf.mxu0
        %v1436 = vadd.f32 0.0, %v1435
        %v1437 = vpop.f32.mrf.mxu0
        %v1438 = vpop.f32.mrf.mxu0
        %v1439 = vadd.f32 0.0, %v1438
        %v1440 = vpop.f32.mrf.mxu0
        %1441 = vmatprep.mubr.bf16.mxu0 0
        %1442 = vmatmul.mubr.bf16.gmra.mxu0 %v474
        %v1443 = vpop.f32.mrf.mxu0
        %v1444 = vadd.f32 0.0, %v1443
        %v1445 = vpop.f32.mrf.mxu0
        %v1446 = vpop.f32.mrf.mxu0
        %v1447 = vadd.f32 0.0, %v1446
        %v1448 = vpop.f32.mrf.mxu0
        %1449 = vmatprep.mubr.bf16.mxu0 0
        %1450 = vmatmul.mubr.bf16.gmra.mxu0 %v477
        %v1451 = vpop.f32.mrf.mxu0
        %v1452 = vadd.f32 0.0, %v1451
        %v1453 = vpop.f32.mrf.mxu0
        %v1454 = vpop.f32.mrf.mxu0
        %v1455 = vadd.f32 0.0, %v1454
        %v1456 = vpop.f32.mrf.mxu0
        %1457 = vmatprep.mubr.bf16.mxu0 0
        %1458 = vmatmul.mubr.bf16.gmra.mxu0 %v480
        %v1459 = vpop.f32.mrf.mxu0
        %v1460 = vadd.f32 0.0, %v1459
        %v1461 = vpop.f32.mrf.mxu0
        %v1462 = vpop.f32.mrf.mxu0
        %v1463 = vadd.f32 0.0, %v1462
        %v1464 = vpop.f32.mrf.mxu0
        %1465 = vmatprep.mubr.bf16.mxu0 0
        %1466 = vmatmul.mubr.bf16.gmra.mxu0 %v483
        %v1467 = vpop.f32.mrf.mxu0
        %v1468 = vadd.f32 0.0, %v1467
        %v1469 = vpop.f32.mrf.mxu0
        %v1470 = vpop.f32.mrf.mxu0
        %v1471 = vadd.f32 0.0, %v1470
        %v1472 = vpop.f32.mrf.mxu0
        %1473 = vmatprep.mubr.bf16.mxu0 0
        %1474 = vmatmul.mubr.bf16.gmra.mxu0 %v486
        %v1475 = vpop.f32.mrf.mxu0
        %v1476 = vadd.f32 0.0, %v1475
        %v1477 = vpop.f32.mrf.mxu0
        %v1478 = vpop.f32.mrf.mxu0
        %v1479 = vadd.f32 0.0, %v1478
        %v1480 = vpop.f32.mrf.mxu0
        %1481 = vmatprep.mubr.bf16.mxu0 0
        %1482 = vmatmul.mubr.bf16.gmra.mxu0 %v489
        %v1483 = vpop.f32.mrf.mxu0
        %v1484 = vadd.f32 0.0, %v1483
        %v1485 = vpop.f32.mrf.mxu0
        %v1486 = vpop.f32.mrf.mxu0
        %v1487 = vadd.f32 0.0, %v1486
        %v1488 = vpop.f32.mrf.mxu0
        %1489 = vmatprep.mubr.bf16.mxu0 0
        %1490 = vmatmul.mubr.bf16.gmra.mxu0 %v492
        %v1491 = vpop.f32.mrf.mxu0
        %v1492 = vadd.f32 0.0, %v1491
        %v1493 = vpop.f32.mrf.mxu0
        %v1494 = vpop.f32.mrf.mxu0
        %v1495 = vadd.f32 0.0, %v1494
        %v1496 = vpop.f32.mrf.mxu0
        %1497 = vmatprep.mubr.bf16.mxu0 0
        %1498 = vmatmul.mubr.bf16.gmra.mxu0 %v495
        %v1499 = vpop.f32.mrf.mxu0
        %v1500 = vadd.f32 0.0, %v1499
        %v1501 = vpop.f32.mrf.mxu0
        %v1502 = vpop.f32.mrf.mxu0
        %v1503 = vadd.f32 0.0, %v1502
        %v1504 = vpop.f32.mrf.mxu0
        %1505 = vmatprep.mubr.bf16.mxu0 0
        %1506 = vmatmul.mubr.bf16.gmra.mxu0 %v498
        %v1507 = vpop.f32.mrf.mxu0
        %v1508 = vadd.f32 0.0, %v1507
        %v1509 = vpop.f32.mrf.mxu0
        %v1510 = vpop.f32.mrf.mxu0
        %v1511 = vadd.f32 0.0, %v1510
        %v1512 = vpop.f32.mrf.mxu0
        %1513 = vmatprep.mubr.bf16.mxu0 0
        %1514 = vmatmul.mubr.bf16.gmra.mxu0 %v501
        %v1515 = vpop.f32.mrf.mxu0
        %v1516 = vadd.f32 0.0, %v1515
        %v1517 = vpop.f32.mrf.mxu0
        %v1518 = vpop.f32.mrf.mxu0
        %v1519 = vadd.f32 0.0, %v1518
        %v1520 = vpop.f32.mrf.mxu0
        %1521 = vmatprep.mubr.bf16.mxu0 0
        %1522 = vmatmul.mubr.bf16.gmra.mxu0 %v504
        %v1523 = vpop.f32.mrf.mxu0
        %v1524 = vadd.f32 0.0, %v1523
        %v1525 = vpop.f32.mrf.mxu0
        %v1526 = vpop.f32.mrf.mxu0
        %v1527 = vadd.f32 0.0, %v1526
        %v1528 = vpop.f32.mrf.mxu0
        %1529 = vmatprep.mubr.bf16.mxu0 0
        %1530 = vmatmul.mubr.bf16.gmra.mxu0 %v1372
        %v1531 = vpop.f32.mrf.mxu0
        %v1532 = vadd.f32 0.0, %v1531
        %v1533 = vpop.f32.mrf.mxu0
        %v1534 = vpop.f32.mrf.mxu0
        %v1535 = vadd.f32 0.0, %v1534
        %v1536 = vpop.f32.mrf.mxu0
        %1537 = vdwg.mxu0
        %v1538 = vadd.f32 %v1331, %v1412
        %v1539 = vadd.f32 %v1332, %v1415
        %v1540 = vadd.f32 %v1333, %v1420
        %v1541 = vadd.f32 %v1334, %v1423
        %v1542 = vadd.f32 %v1335, %v1428
        %v1543 = vadd.f32 %v1336, %v1431
        %v1544 = vadd.f32 %v1337, %v1436
        %v1545 = vadd.f32 %v1338, %v1439
        %v1546 = vadd.f32 %v1339, %v1444
        %v1547 = vadd.f32 %v1340, %v1447
        %v1548 = vadd.f32 %v1341, %v1452
        %v1549 = vadd.f32 %v1342, %v1455
        %v1550 = vadd.f32 %v1343, %v1460
        %v1551 = vadd.f32 %v1344, %v1463
        %v1552 = vadd.f32 %v1345, %v1468
        %v1553 = vadd.f32 %v1346, %v1471
        %v1554 = vadd.f32 %v1347, %v1476
        %v1555 = vadd.f32 %v1348, %v1479
        %v1556 = vadd.f32 %v1349, %v1484
        %v1557 = vadd.f32 %v1350, %v1487
        %v1558 = vadd.f32 %v1351, %v1492
        %v1559 = vadd.f32 %v1352, %v1495
        %v1560 = vadd.f32 %v1353, %v1500
        %v1561 = vadd.f32 %v1354, %v1503
        %v1562 = vadd.f32 %v1355, %v1508
        %v1563 = vadd.f32 %v1356, %v1511
        %v1564 = vadd.f32 %v1357, %v1516
        %v1565 = vadd.f32 %v1358, %v1519
        %v1566 = vadd.f32 %v1359, %v1524
        %v1567 = vadd.f32 %v1360, %v1527
        %v1568 = vadd.f32 %v1361, %v1532
        %v1569 = vadd.f32 %v1362, %v1535
        %v1571 = vrot.slane %v322, 1
        %v1572 = vsel %vm887, %v919, %v1571
        %v1574 = vsel %vm457, %v1572, 0
        %v1577 = vand.u32 %v264, %v509
        %1579 = vmatprep.subr.bf16.mxu0 0
        %1580 = vmatpush1.bf16.msra.mxu0 0
        %1581 = vmatprep.subr.bf16.mxu0 0
        %1582 = vmatpush1.bf16.msra.mxu0 0
        %1583 = vmatprep.subr.bf16.mxu0 0
        %1584 = vmatpush1.bf16.msra.mxu0 0
        %1585 = vmatprep.subr.bf16.mxu0 0
        %1586 = vmatpush1.bf16.msra.mxu0 0
        %1587 = vmatprep.subr.bf16.mxu0 0
        %1588 = vmatpush1.bf16.msra.mxu0 0
        %1589 = vmatprep.subr.bf16.mxu0 0
        %1590 = vmatpush1.bf16.msra.mxu0 0
        %1591 = vmatprep.subr.bf16.mxu0 0
        %1592 = vmatpush1.bf16.msra.mxu0 0
        %1593 = vmatprep.subr.bf16.mxu0 0
        %1594 = vmatpush1.bf16.msra.mxu0 %v1577
        %1595 = vmatprep.subr.bf16.mxu0 0
        %1596 = vmatpush2.bf16.msra.mxu0 0
        %1597 = vmatprep.subr.bf16.mxu0 0
        %1598 = vmatpush2.bf16.msra.mxu0 0
        %1599 = vmatprep.subr.bf16.mxu0 0
        %1600 = vmatpush2.bf16.msra.mxu0 0
        %1601 = vmatprep.subr.bf16.mxu0 0
        %1602 = vmatpush2.bf16.msra.mxu0 0
        %1603 = vmatprep.subr.bf16.mxu0 0
        %1604 = vmatpush2.bf16.msra.mxu0 0
        %1605 = vmatprep.subr.bf16.mxu0 0
        %1606 = vmatpush2.bf16.msra.mxu0 0
        %1607 = vmatprep.subr.bf16.mxu0 0
        %1608 = vmatpush2.bf16.msra.mxu0 0
        %1609 = vmatprep.subr.bf16.mxu0 0
        %1610 = vmatpush2.bf16.msra.mxu0 0
        %1611 = vmatprep.mubr.bf16.mxu0 0
        %1612 = vmatmul.mubr.bf16.gmra.mxu0 %v925
        %v1613 = vpop.f32.mrf.mxu0
        %v1614 = vadd.f32 0.0, %v1613
        %v1615 = vpop.f32.mrf.mxu0
        %v1616 = vpop.f32.mrf.mxu0
        %v1617 = vadd.f32 0.0, %v1616
        %v1618 = vpop.f32.mrf.mxu0
        %1619 = vmatprep.mubr.bf16.mxu0 0
        %1620 = vmatmul.mubr.bf16.gmra.mxu0 %v928
        %v1621 = vpop.f32.mrf.mxu0
        %v1622 = vadd.f32 0.0, %v1621
        %v1623 = vpop.f32.mrf.mxu0
        %v1624 = vpop.f32.mrf.mxu0
        %v1625 = vadd.f32 0.0, %v1624
        %v1626 = vpop.f32.mrf.mxu0
        %1627 = vmatprep.mubr.bf16.mxu0 0
        %1628 = vmatmul.mubr.bf16.gmra.mxu0 %v931
        %v1629 = vpop.f32.mrf.mxu0
        %v1630 = vadd.f32 0.0, %v1629
        %v1631 = vpop.f32.mrf.mxu0
        %v1632 = vpop.f32.mrf.mxu0
        %v1633 = vadd.f32 0.0, %v1632
        %v1634 = vpop.f32.mrf.mxu0
        %1635 = vmatprep.mubr.bf16.mxu0 0
        %1636 = vmatmul.mubr.bf16.gmra.mxu0 %v934
        %v1637 = vpop.f32.mrf.mxu0
        %v1638 = vadd.f32 0.0, %v1637
        %v1639 = vpop.f32.mrf.mxu0
        %v1640 = vpop.f32.mrf.mxu0
        %v1641 = vadd.f32 0.0, %v1640
        %v1642 = vpop.f32.mrf.mxu0
        %1643 = vmatprep.mubr.bf16.mxu0 0
        %1644 = vmatmul.mubr.bf16.gmra.mxu0 %v937
        %v1645 = vpop.f32.mrf.mxu0
        %v1646 = vadd.f32 0.0, %v1645
        %v1647 = vpop.f32.mrf.mxu0
        %v1648 = vpop.f32.mrf.mxu0
        %v1649 = vadd.f32 0.0, %v1648
        %v1650 = vpop.f32.mrf.mxu0
        %1651 = vmatprep.mubr.bf16.mxu0 0
        %1652 = vmatmul.mubr.bf16.gmra.mxu0 %v940
        %v1653 = vpop.f32.mrf.mxu0
        %v1654 = vadd.f32 0.0, %v1653
        %v1655 = vpop.f32.mrf.mxu0
        %v1656 = vpop.f32.mrf.mxu0
        %v1657 = vadd.f32 0.0, %v1656
        %v1658 = vpop.f32.mrf.mxu0
        %1659 = vmatprep.mubr.bf16.mxu0 0
        %1660 = vmatmul.mubr.bf16.gmra.mxu0 %v943
        %v1661 = vpop.f32.mrf.mxu0
        %v1662 = vadd.f32 0.0, %v1661
        %v1663 = vpop.f32.mrf.mxu0
        %v1664 = vpop.f32.mrf.mxu0
        %v1665 = vadd.f32 0.0, %v1664
        %v1666 = vpop.f32.mrf.mxu0
        %1667 = vmatprep.mubr.bf16.mxu0 0
        %1668 = vmatmul.mubr.bf16.gmra.mxu0 %v946
        %v1669 = vpop.f32.mrf.mxu0
        %v1670 = vadd.f32 0.0, %v1669
        %v1671 = vpop.f32.mrf.mxu0
        %v1672 = vpop.f32.mrf.mxu0
        %v1673 = vadd.f32 0.0, %v1672
        %v1674 = vpop.f32.mrf.mxu0
        %1675 = vmatprep.mubr.bf16.mxu0 0
        %1676 = vmatmul.mubr.bf16.gmra.mxu0 %v949
        %v1677 = vpop.f32.mrf.mxu0
        %v1678 = vadd.f32 0.0, %v1677
        %v1679 = vpop.f32.mrf.mxu0
        %v1680 = vpop.f32.mrf.mxu0
        %v1681 = vadd.f32 0.0, %v1680
        %v1682 = vpop.f32.mrf.mxu0
        %1683 = vmatprep.mubr.bf16.mxu0 0
        %1684 = vmatmul.mubr.bf16.gmra.mxu0 %v952
        %v1685 = vpop.f32.mrf.mxu0
        %v1686 = vadd.f32 0.0, %v1685
        %v1687 = vpop.f32.mrf.mxu0
        %v1688 = vpop.f32.mrf.mxu0
        %v1689 = vadd.f32 0.0, %v1688
        %v1690 = vpop.f32.mrf.mxu0
        %1691 = vmatprep.mubr.bf16.mxu0 0
        %1692 = vmatmul.mubr.bf16.gmra.mxu0 %v955
        %v1693 = vpop.f32.mrf.mxu0
        %v1694 = vadd.f32 0.0, %v1693
        %v1695 = vpop.f32.mrf.mxu0
        %v1696 = vpop.f32.mrf.mxu0
        %v1697 = vadd.f32 0.0, %v1696
        %v1698 = vpop.f32.mrf.mxu0
        %1699 = vmatprep.mubr.bf16.mxu0 0
        %1700 = vmatmul.mubr.bf16.gmra.mxu0 %v958
        %v1701 = vpop.f32.mrf.mxu0
        %v1702 = vadd.f32 0.0, %v1701
        %v1703 = vpop.f32.mrf.mxu0
        %v1704 = vpop.f32.mrf.mxu0
        %v1705 = vadd.f32 0.0, %v1704
        %v1706 = vpop.f32.mrf.mxu0
        %1707 = vmatprep.mubr.bf16.mxu0 0
        %1708 = vmatmul.mubr.bf16.gmra.mxu0 %v961
        %v1709 = vpop.f32.mrf.mxu0
        %v1710 = vadd.f32 0.0, %v1709
        %v1711 = vpop.f32.mrf.mxu0
        %v1712 = vpop.f32.mrf.mxu0
        %v1713 = vadd.f32 0.0, %v1712
        %v1714 = vpop.f32.mrf.mxu0
        %1715 = vmatprep.mubr.bf16.mxu0 0
        %1716 = vmatmul.mubr.bf16.gmra.mxu0 %v964
        %v1717 = vpop.f32.mrf.mxu0
        %v1718 = vadd.f32 0.0, %v1717
        %v1719 = vpop.f32.mrf.mxu0
        %v1720 = vpop.f32.mrf.mxu0
        %v1721 = vadd.f32 0.0, %v1720
        %v1722 = vpop.f32.mrf.mxu0
        %1723 = vmatprep.mubr.bf16.mxu0 0
        %1724 = vmatmul.mubr.bf16.gmra.mxu0 %v967
        %v1725 = vpop.f32.mrf.mxu0
        %v1726 = vadd.f32 0.0, %v1725
        %v1727 = vpop.f32.mrf.mxu0
        %v1728 = vpop.f32.mrf.mxu0
        %v1729 = vadd.f32 0.0, %v1728
        %v1730 = vpop.f32.mrf.mxu0
        %1731 = vmatprep.mubr.bf16.mxu0 0
        %1732 = vmatmul.mubr.bf16.gmra.mxu0 %v1574
        %v1733 = vpop.f32.mrf.mxu0
        %v1734 = vadd.f32 0.0, %v1733
        %v1735 = vpop.f32.mrf.mxu0
        %v1736 = vpop.f32.mrf.mxu0
        %v1737 = vadd.f32 0.0, %v1736
        %v1738 = vpop.f32.mrf.mxu0
        %1739 = vdwg.mxu0
        %v1740 = vadd.f32 %v1538, %v1614
        %v1741 = vadd.f32 %v1539, %v1617
        %v1742 = vadd.f32 %v1540, %v1622
        %v1743 = vadd.f32 %v1541, %v1625
        %v1744 = vadd.f32 %v1542, %v1630
        %v1745 = vadd.f32 %v1543, %v1633
        %v1746 = vadd.f32 %v1544, %v1638
        %v1747 = vadd.f32 %v1545, %v1641
        %v1748 = vadd.f32 %v1546, %v1646
        %v1749 = vadd.f32 %v1547, %v1649
        %v1750 = vadd.f32 %v1548, %v1654
        %v1751 = vadd.f32 %v1549, %v1657
        %v1752 = vadd.f32 %v1550, %v1662
        %v1753 = vadd.f32 %v1551, %v1665
        %v1754 = vadd.f32 %v1552, %v1670
        %v1755 = vadd.f32 %v1553, %v1673
        %v1756 = vadd.f32 %v1554, %v1678
        %v1757 = vadd.f32 %v1555, %v1681
        %v1758 = vadd.f32 %v1556, %v1686
        %v1759 = vadd.f32 %v1557, %v1689
        %v1760 = vadd.f32 %v1558, %v1694
        %v1761 = vadd.f32 %v1559, %v1697
        %v1762 = vadd.f32 %v1560, %v1702
        %v1763 = vadd.f32 %v1561, %v1705
        %v1764 = vadd.f32 %v1562, %v1710
        %v1765 = vadd.f32 %v1563, %v1713
        %v1766 = vadd.f32 %v1564, %v1718
        %v1767 = vadd.f32 %v1565, %v1721
        %v1768 = vadd.f32 %v1566, %v1726
        %v1769 = vadd.f32 %v1567, %v1729
        %v1770 = vadd.f32 %v1568, %v1734
        %v1771 = vadd.f32 %v1569, %v1737
        %v1772 = vsel %vm457, %v322, 0
        %v1775 = vand.u32 %v265, %v509
        %1777 = vmatprep.subr.bf16.mxu0 0
        %1778 = vmatpush1.bf16.msra.mxu0 0
        %1779 = vmatprep.subr.bf16.mxu0 0
        %1780 = vmatpush1.bf16.msra.mxu0 0
        %1781 = vmatprep.subr.bf16.mxu0 0
        %1782 = vmatpush1.bf16.msra.mxu0 0
        %1783 = vmatprep.subr.bf16.mxu0 0
        %1784 = vmatpush1.bf16.msra.mxu0 0
        %1785 = vmatprep.subr.bf16.mxu0 0
        %1786 = vmatpush1.bf16.msra.mxu0 0
        %1787 = vmatprep.subr.bf16.mxu0 0
        %1788 = vmatpush1.bf16.msra.mxu0 0
        %1789 = vmatprep.subr.bf16.mxu0 0
        %1790 = vmatpush1.bf16.msra.mxu0 0
        %1791 = vmatprep.subr.bf16.mxu0 0
        %1792 = vmatpush1.bf16.msra.mxu0 %v1775
        %1793 = vmatprep.subr.bf16.mxu0 0
        %1794 = vmatpush2.bf16.msra.mxu0 0
        %1795 = vmatprep.subr.bf16.mxu0 0
        %1796 = vmatpush2.bf16.msra.mxu0 0
        %1797 = vmatprep.subr.bf16.mxu0 0
        %1798 = vmatpush2.bf16.msra.mxu0 0
        %1799 = vmatprep.subr.bf16.mxu0 0
        %1800 = vmatpush2.bf16.msra.mxu0 0
        %1801 = vmatprep.subr.bf16.mxu0 0
        %1802 = vmatpush2.bf16.msra.mxu0 0
        %1803 = vmatprep.subr.bf16.mxu0 0
        %1804 = vmatpush2.bf16.msra.mxu0 0
        %1805 = vmatprep.subr.bf16.mxu0 0
        %1806 = vmatpush2.bf16.msra.mxu0 0
        %1807 = vmatprep.subr.bf16.mxu0 0
        %1808 = vmatpush2.bf16.msra.mxu0 0
        %1809 = vmatprep.mubr.bf16.mxu0 0
        %1810 = vmatmul.mubr.bf16.gmra.mxu0 %v678
        %v1811 = vpop.f32.mrf.mxu0
        %v1812 = vadd.f32 0.0, %v1811
        %v1813 = vpop.f32.mrf.mxu0
        %v1814 = vpop.f32.mrf.mxu0
        %v1815 = vadd.f32 0.0, %v1814
        %v1816 = vpop.f32.mrf.mxu0
        %1817 = vmatprep.mubr.bf16.mxu0 0
        %1818 = vmatmul.mubr.bf16.gmra.mxu0 %v680
        %v1819 = vpop.f32.mrf.mxu0
        %v1820 = vadd.f32 0.0, %v1819
        %v1821 = vpop.f32.mrf.mxu0
        %v1822 = vpop.f32.mrf.mxu0
        %v1823 = vadd.f32 0.0, %v1822
        %v1824 = vpop.f32.mrf.mxu0
        %1825 = vmatprep.mubr.bf16.mxu0 0
        %1826 = vmatmul.mubr.bf16.gmra.mxu0 %v682
        %v1827 = vpop.f32.mrf.mxu0
        %v1828 = vadd.f32 0.0, %v1827
        %v1829 = vpop.f32.mrf.mxu0
        %v1830 = vpop.f32.mrf.mxu0
        %v1831 = vadd.f32 0.0, %v1830
        %v1832 = vpop.f32.mrf.mxu0
        %1833 = vmatprep.mubr.bf16.mxu0 0
        %1834 = vmatmul.mubr.bf16.gmra.mxu0 %v684
        %v1835 = vpop.f32.mrf.mxu0
        %v1836 = vadd.f32 0.0, %v1835
        %v1837 = vpop.f32.mrf.mxu0
        %v1838 = vpop.f32.mrf.mxu0
        %v1839 = vadd.f32 0.0, %v1838
        %v1840 = vpop.f32.mrf.mxu0
        %1841 = vmatprep.mubr.bf16.mxu0 0
        %1842 = vmatmul.mubr.bf16.gmra.mxu0 %v686
        %v1843 = vpop.f32.mrf.mxu0
        %v1844 = vadd.f32 0.0, %v1843
        %v1845 = vpop.f32.mrf.mxu0
        %v1846 = vpop.f32.mrf.mxu0
        %v1847 = vadd.f32 0.0, %v1846
        %v1848 = vpop.f32.mrf.mxu0
        %1849 = vmatprep.mubr.bf16.mxu0 0
        %1850 = vmatmul.mubr.bf16.gmra.mxu0 %v688
        %v1851 = vpop.f32.mrf.mxu0
        %v1852 = vadd.f32 0.0, %v1851
        %v1853 = vpop.f32.mrf.mxu0
        %v1854 = vpop.f32.mrf.mxu0
        %v1855 = vadd.f32 0.0, %v1854
        %v1856 = vpop.f32.mrf.mxu0
        %1857 = vmatprep.mubr.bf16.mxu0 0
        %1858 = vmatmul.mubr.bf16.gmra.mxu0 %v690
        %v1859 = vpop.f32.mrf.mxu0
        %v1860 = vadd.f32 0.0, %v1859
        %v1861 = vpop.f32.mrf.mxu0
        %v1862 = vpop.f32.mrf.mxu0
        %v1863 = vadd.f32 0.0, %v1862
        %v1864 = vpop.f32.mrf.mxu0
        %1865 = vmatprep.mubr.bf16.mxu0 0
        %1866 = vmatmul.mubr.bf16.gmra.mxu0 %v692
        %v1867 = vpop.f32.mrf.mxu0
        %v1868 = vadd.f32 0.0, %v1867
        %v1869 = vpop.f32.mrf.mxu0
        %v1870 = vpop.f32.mrf.mxu0
        %v1871 = vadd.f32 0.0, %v1870
        %v1872 = vpop.f32.mrf.mxu0
        %1873 = vmatprep.mubr.bf16.mxu0 0
        %1874 = vmatmul.mubr.bf16.gmra.mxu0 %v694
        %v1875 = vpop.f32.mrf.mxu0
        %v1876 = vadd.f32 0.0, %v1875
        %v1877 = vpop.f32.mrf.mxu0
        %v1878 = vpop.f32.mrf.mxu0
        %v1879 = vadd.f32 0.0, %v1878
        %v1880 = vpop.f32.mrf.mxu0
        %1881 = vmatprep.mubr.bf16.mxu0 0
        %1882 = vmatmul.mubr.bf16.gmra.mxu0 %v696
        %v1883 = vpop.f32.mrf.mxu0
        %v1884 = vadd.f32 0.0, %v1883
        %v1885 = vpop.f32.mrf.mxu0
        %v1886 = vpop.f32.mrf.mxu0
        %v1887 = vadd.f32 0.0, %v1886
        %v1888 = vpop.f32.mrf.mxu0
        %1889 = vmatprep.mubr.bf16.mxu0 0
        %1890 = vmatmul.mubr.bf16.gmra.mxu0 %v698
        %v1891 = vpop.f32.mrf.mxu0
        %v1892 = vadd.f32 0.0, %v1891
        %v1893 = vpop.f32.mrf.mxu0
        %v1894 = vpop.f32.mrf.mxu0
        %v1895 = vadd.f32 0.0, %v1894
        %v1896 = vpop.f32.mrf.mxu0
        %1897 = vmatprep.mubr.bf16.mxu0 0
        %1898 = vmatmul.mubr.bf16.gmra.mxu0 %v700
        %v1899 = vpop.f32.mrf.mxu0
        %v1900 = vadd.f32 0.0, %v1899
        %v1901 = vpop.f32.mrf.mxu0
        %v1902 = vpop.f32.mrf.mxu0
        %v1903 = vadd.f32 0.0, %v1902
        %v1904 = vpop.f32.mrf.mxu0
        %1905 = vmatprep.mubr.bf16.mxu0 0
        %1906 = vmatmul.mubr.bf16.gmra.mxu0 %v702
        %v1907 = vpop.f32.mrf.mxu0
        %v1908 = vadd.f32 0.0, %v1907
        %v1909 = vpop.f32.mrf.mxu0
        %v1910 = vpop.f32.mrf.mxu0
        %v1911 = vadd.f32 0.0, %v1910
        %v1912 = vpop.f32.mrf.mxu0
        %1913 = vmatprep.mubr.bf16.mxu0 0
        %1914 = vmatmul.mubr.bf16.gmra.mxu0 %v704
        %v1915 = vpop.f32.mrf.mxu0
        %v1916 = vadd.f32 0.0, %v1915
        %v1917 = vpop.f32.mrf.mxu0
        %v1918 = vpop.f32.mrf.mxu0
        %v1919 = vadd.f32 0.0, %v1918
        %v1920 = vpop.f32.mrf.mxu0
        %1921 = vmatprep.mubr.bf16.mxu0 0
        %1922 = vmatmul.mubr.bf16.gmra.mxu0 %v1165
        %v1923 = vpop.f32.mrf.mxu0
        %v1924 = vadd.f32 0.0, %v1923
        %v1925 = vpop.f32.mrf.mxu0
        %v1926 = vpop.f32.mrf.mxu0
        %v1927 = vadd.f32 0.0, %v1926
        %v1928 = vpop.f32.mrf.mxu0
        %1929 = vmatprep.mubr.bf16.mxu0 0
        %1930 = vmatmul.mubr.bf16.gmra.mxu0 %v1772
        %v1931 = vpop.f32.mrf.mxu0
        %v1932 = vadd.f32 0.0, %v1931
        %v1933 = vpop.f32.mrf.mxu0
        %v1934 = vpop.f32.mrf.mxu0
        %v1935 = vadd.f32 0.0, %v1934
        %v1936 = vpop.f32.mrf.mxu0
        %1937 = vdwg.mxu0
        %v1938 = vadd.f32 %v1740, %v1812
        %v1939 = vadd.f32 %v1741, %v1815
        %v1940 = vadd.f32 %v1742, %v1820
        %v1941 = vadd.f32 %v1743, %v1823
        %v1942 = vadd.f32 %v1744, %v1828
        %v1943 = vadd.f32 %v1745, %v1831
        %v1944 = vadd.f32 %v1746, %v1836
        %v1945 = vadd.f32 %v1747, %v1839
        %v1946 = vadd.f32 %v1748, %v1844
        %v1947 = vadd.f32 %v1749, %v1847
        %v1948 = vadd.f32 %v1750, %v1852
        %v1949 = vadd.f32 %v1751, %v1855
        %v1950 = vadd.f32 %v1752, %v1860
        %v1951 = vadd.f32 %v1753, %v1863
        %v1952 = vadd.f32 %v1754, %v1868
        %v1953 = vadd.f32 %v1755, %v1871
        %v1954 = vadd.f32 %v1756, %v1876
        %v1955 = vadd.f32 %v1757, %v1879
        %v1956 = vadd.f32 %v1758, %v1884
        %v1957 = vadd.f32 %v1759, %v1887
        %v1958 = vadd.f32 %v1760, %v1892
        %v1959 = vadd.f32 %v1761, %v1895
        %v1960 = vadd.f32 %v1762, %v1900
        %v1961 = vadd.f32 %v1763, %v1903
        %v1962 = vadd.f32 %v1764, %v1908
        %v1963 = vadd.f32 %v1765, %v1911
        %v1964 = vadd.f32 %v1766, %v1916
        %v1965 = vadd.f32 %v1767, %v1919
        %v1966 = vadd.f32 %v1768, %v1924
        %v1967 = vadd.f32 %v1769, %v1927
        %v1968 = vadd.f32 %v1770, %v1932
        %v1969 = vadd.f32 %v1771, %v1935
        %v1970 = vshrl.u32 %v322, 16
        %v1972 = vor.u32 %v1970, %v1369
        %v1974 = vshll.u32 %v323, 16
        %v1976 = vrot.slane %v1974, 1
        %v1977 = vsel %vm324, %v1972, %v1976
        %v1979 = vsel %vm457, %v1977, 0
        %v1982 = vand.u32 %v266, %v509
        %1984 = vmatprep.subr.bf16.mxu0 0
        %1985 = vmatpush1.bf16.msra.mxu0 0
        %1986 = vmatprep.subr.bf16.mxu0 0
        %1987 = vmatpush1.bf16.msra.mxu0 0
        %1988 = vmatprep.subr.bf16.mxu0 0
        %1989 = vmatpush1.bf16.msra.mxu0 0
        %1990 = vmatprep.subr.bf16.mxu0 0
        %1991 = vmatpush1.bf16.msra.mxu0 0
        %1992 = vmatprep.subr.bf16.mxu0 0
        %1993 = vmatpush1.bf16.msra.mxu0 0
        %1994 = vmatprep.subr.bf16.mxu0 0
        %1995 = vmatpush1.bf16.msra.mxu0 0
        %1996 = vmatprep.subr.bf16.mxu0 0
        %1997 = vmatpush1.bf16.msra.mxu0 0
        %1998 = vmatprep.subr.bf16.mxu0 0
        %1999 = vmatpush1.bf16.msra.mxu0 %v1982
        %2000 = vmatprep.subr.bf16.mxu0 0
        %2001 = vmatpush2.bf16.msra.mxu0 0
        %2002 = vmatprep.subr.bf16.mxu0 0
        %2003 = vmatpush2.bf16.msra.mxu0 0
        %2004 = vmatprep.subr.bf16.mxu0 0
        %2005 = vmatpush2.bf16.msra.mxu0 0
        %2006 = vmatprep.subr.bf16.mxu0 0
        %2007 = vmatpush2.bf16.msra.mxu0 0
        %2008 = vmatprep.subr.bf16.mxu0 0
        %2009 = vmatpush2.bf16.msra.mxu0 0
        %2010 = vmatprep.subr.bf16.mxu0 0
        %2011 = vmatpush2.bf16.msra.mxu0 0
        %2012 = vmatprep.subr.bf16.mxu0 0
        %2013 = vmatpush2.bf16.msra.mxu0 0
        %2014 = vmatprep.subr.bf16.mxu0 0
        %2015 = vmatpush2.bf16.msra.mxu0 0
        %2016 = vmatprep.mubr.bf16.mxu0 0
        %2017 = vmatmul.mubr.bf16.gmra.mxu0 %v465
        %v2018 = vpop.f32.mrf.mxu0
        %v2019 = vadd.f32 0.0, %v2018
        %v2020 = vpop.f32.mrf.mxu0
        %v2021 = vpop.f32.mrf.mxu0
        %v2022 = vadd.f32 0.0, %v2021
        %v2023 = vpop.f32.mrf.mxu0
        %2024 = vmatprep.mubr.bf16.mxu0 0
        %2025 = vmatmul.mubr.bf16.gmra.mxu0 %v468
        %v2026 = vpop.f32.mrf.mxu0
        %v2027 = vadd.f32 0.0, %v2026
        %v2028 = vpop.f32.mrf.mxu0
        %v2029 = vpop.f32.mrf.mxu0
        %v2030 = vadd.f32 0.0, %v2029
        %v2031 = vpop.f32.mrf.mxu0
        %2032 = vmatprep.mubr.bf16.mxu0 0
        %2033 = vmatmul.mubr.bf16.gmra.mxu0 %v471
        %v2034 = vpop.f32.mrf.mxu0
        %v2035 = vadd.f32 0.0, %v2034
        %v2036 = vpop.f32.mrf.mxu0
        %v2037 = vpop.f32.mrf.mxu0
        %v2038 = vadd.f32 0.0, %v2037
        %v2039 = vpop.f32.mrf.mxu0
        %2040 = vmatprep.mubr.bf16.mxu0 0
        %2041 = vmatmul.mubr.bf16.gmra.mxu0 %v474
        %v2042 = vpop.f32.mrf.mxu0
        %v2043 = vadd.f32 0.0, %v2042
        %v2044 = vpop.f32.mrf.mxu0
        %v2045 = vpop.f32.mrf.mxu0
        %v2046 = vadd.f32 0.0, %v2045
        %v2047 = vpop.f32.mrf.mxu0
        %2048 = vmatprep.mubr.bf16.mxu0 0
        %2049 = vmatmul.mubr.bf16.gmra.mxu0 %v477
        %v2050 = vpop.f32.mrf.mxu0
        %v2051 = vadd.f32 0.0, %v2050
        %v2052 = vpop.f32.mrf.mxu0
        %v2053 = vpop.f32.mrf.mxu0
        %v2054 = vadd.f32 0.0, %v2053
        %v2055 = vpop.f32.mrf.mxu0
        %2056 = vmatprep.mubr.bf16.mxu0 0
        %2057 = vmatmul.mubr.bf16.gmra.mxu0 %v480
        %v2058 = vpop.f32.mrf.mxu0
        %v2059 = vadd.f32 0.0, %v2058
        %v2060 = vpop.f32.mrf.mxu0
        %v2061 = vpop.f32.mrf.mxu0
        %v2062 = vadd.f32 0.0, %v2061
        %v2063 = vpop.f32.mrf.mxu0
        %2064 = vmatprep.mubr.bf16.mxu0 0
        %2065 = vmatmul.mubr.bf16.gmra.mxu0 %v483
        %v2066 = vpop.f32.mrf.mxu0
        %v2067 = vadd.f32 0.0, %v2066
        %v2068 = vpop.f32.mrf.mxu0
        %v2069 = vpop.f32.mrf.mxu0
        %v2070 = vadd.f32 0.0, %v2069
        %v2071 = vpop.f32.mrf.mxu0
        %2072 = vmatprep.mubr.bf16.mxu0 0
        %2073 = vmatmul.mubr.bf16.gmra.mxu0 %v486
        %v2074 = vpop.f32.mrf.mxu0
        %v2075 = vadd.f32 0.0, %v2074
        %v2076 = vpop.f32.mrf.mxu0
        %v2077 = vpop.f32.mrf.mxu0
        %v2078 = vadd.f32 0.0, %v2077
        %v2079 = vpop.f32.mrf.mxu0
        %2080 = vmatprep.mubr.bf16.mxu0 0
        %2081 = vmatmul.mubr.bf16.gmra.mxu0 %v489
        %v2082 = vpop.f32.mrf.mxu0
        %v2083 = vadd.f32 0.0, %v2082
        %v2084 = vpop.f32.mrf.mxu0
        %v2085 = vpop.f32.mrf.mxu0
        %v2086 = vadd.f32 0.0, %v2085
        %v2087 = vpop.f32.mrf.mxu0
        %2088 = vmatprep.mubr.bf16.mxu0 0
        %2089 = vmatmul.mubr.bf16.gmra.mxu0 %v492
        %v2090 = vpop.f32.mrf.mxu0
        %v2091 = vadd.f32 0.0, %v2090
        %v2092 = vpop.f32.mrf.mxu0
        %v2093 = vpop.f32.mrf.mxu0
        %v2094 = vadd.f32 0.0, %v2093
        %v2095 = vpop.f32.mrf.mxu0
        %2096 = vmatprep.mubr.bf16.mxu0 0
        %2097 = vmatmul.mubr.bf16.gmra.mxu0 %v495
        %v2098 = vpop.f32.mrf.mxu0
        %v2099 = vadd.f32 0.0, %v2098
        %v2100 = vpop.f32.mrf.mxu0
        %v2101 = vpop.f32.mrf.mxu0
        %v2102 = vadd.f32 0.0, %v2101
        %v2103 = vpop.f32.mrf.mxu0
        %2104 = vmatprep.mubr.bf16.mxu0 0
        %2105 = vmatmul.mubr.bf16.gmra.mxu0 %v498
        %v2106 = vpop.f32.mrf.mxu0
        %v2107 = vadd.f32 0.0, %v2106
        %v2108 = vpop.f32.mrf.mxu0
        %v2109 = vpop.f32.mrf.mxu0
        %v2110 = vadd.f32 0.0, %v2109
        %v2111 = vpop.f32.mrf.mxu0
        %2112 = vmatprep.mubr.bf16.mxu0 0
        %2113 = vmatmul.mubr.bf16.gmra.mxu0 %v501
        %v2114 = vpop.f32.mrf.mxu0
        %v2115 = vadd.f32 0.0, %v2114
        %v2116 = vpop.f32.mrf.mxu0
        %v2117 = vpop.f32.mrf.mxu0
        %v2118 = vadd.f32 0.0, %v2117
        %v2119 = vpop.f32.mrf.mxu0
        %2120 = vmatprep.mubr.bf16.mxu0 0
        %2121 = vmatmul.mubr.bf16.gmra.mxu0 %v504
        %v2122 = vpop.f32.mrf.mxu0
        %v2123 = vadd.f32 0.0, %v2122
        %v2124 = vpop.f32.mrf.mxu0
        %v2125 = vpop.f32.mrf.mxu0
        %v2126 = vadd.f32 0.0, %v2125
        %v2127 = vpop.f32.mrf.mxu0
        %2128 = vmatprep.mubr.bf16.mxu0 0
        %2129 = vmatmul.mubr.bf16.gmra.mxu0 %v1372
        %v2130 = vpop.f32.mrf.mxu0
        %v2131 = vadd.f32 0.0, %v2130
        %v2132 = vpop.f32.mrf.mxu0
        %v2133 = vpop.f32.mrf.mxu0
        %v2134 = vadd.f32 0.0, %v2133
        %v2135 = vpop.f32.mrf.mxu0
        %2136 = vmatprep.mubr.bf16.mxu0 0
        %2137 = vmatmul.mubr.bf16.gmra.mxu0 %v1979
        %v2138 = vpop.f32.mrf.mxu0
        %v2139 = vadd.f32 0.0, %v2138
        %v2140 = vpop.f32.mrf.mxu0
        %v2141 = vpop.f32.mrf.mxu0
        %v2142 = vadd.f32 0.0, %v2141
        %v2143 = vpop.f32.mrf.mxu0
        %2144 = vdwg.mxu0
        %v2145 = vadd.f32 %v1938, %v2019
        %v2146 = vadd.f32 %v1939, %v2022
        %v2147 = vadd.f32 %v1940, %v2027
        %v2148 = vadd.f32 %v1941, %v2030
        %v2149 = vadd.f32 %v1942, %v2035
        %v2150 = vadd.f32 %v1943, %v2038
        %v2151 = vadd.f32 %v1944, %v2043
        %v2152 = vadd.f32 %v1945, %v2046
        %v2153 = vadd.f32 %v1946, %v2051
        %v2154 = vadd.f32 %v1947, %v2054
        %v2155 = vadd.f32 %v1948, %v2059
        %v2156 = vadd.f32 %v1949, %v2062
        %v2157 = vadd.f32 %v1950, %v2067
        %v2158 = vadd.f32 %v1951, %v2070
        %v2159 = vadd.f32 %v1952, %v2075
        %v2160 = vadd.f32 %v1953, %v2078
        %v2161 = vadd.f32 %v1954, %v2083
        %v2162 = vadd.f32 %v1955, %v2086
        %v2163 = vadd.f32 %v1956, %v2091
        %v2164 = vadd.f32 %v1957, %v2094
        %v2165 = vadd.f32 %v1958, %v2099
        %v2166 = vadd.f32 %v1959, %v2102
        %v2167 = vadd.f32 %v1960, %v2107
        %v2168 = vadd.f32 %v1961, %v2110
        %v2169 = vadd.f32 %v1962, %v2115
        %v2170 = vadd.f32 %v1963, %v2118
        %v2171 = vadd.f32 %v1964, %v2123
        %v2172 = vadd.f32 %v1965, %v2126
        %v2173 = vadd.f32 %v1966, %v2131
        %v2174 = vadd.f32 %v1967, %v2134
        %v2175 = vadd.f32 %v1968, %v2139
        %v2176 = vadd.f32 %v1969, %v2142
        %v2178 = vrot.slane %v323, 1
        %v2179 = vsel %vm887, %v1571, %v2178
        %v2181 = vsel %vm457, %v2179, 0
        %v2184 = vand.u32 %v267, %v509
        %2186 = vmatprep.subr.bf16.mxu0 0
        %2187 = vmatpush1.bf16.msra.mxu0 0
        %2188 = vmatprep.subr.bf16.mxu0 0
        %2189 = vmatpush1.bf16.msra.mxu0 0
        %2190 = vmatprep.subr.bf16.mxu0 0
        %2191 = vmatpush1.bf16.msra.mxu0 0
        %2192 = vmatprep.subr.bf16.mxu0 0
        %2193 = vmatpush1.bf16.msra.mxu0 0
        %2194 = vmatprep.subr.bf16.mxu0 0
        %2195 = vmatpush1.bf16.msra.mxu0 0
        %2196 = vmatprep.subr.bf16.mxu0 0
        %2197 = vmatpush1.bf16.msra.mxu0 0
        %2198 = vmatprep.subr.bf16.mxu0 0
        %2199 = vmatpush1.bf16.msra.mxu0 0
        %2200 = vmatprep.subr.bf16.mxu0 0
        %2201 = vmatpush1.bf16.msra.mxu0 %v2184
        %2202 = vmatprep.subr.bf16.mxu0 0
        %2203 = vmatpush2.bf16.msra.mxu0 0
        %2204 = vmatprep.subr.bf16.mxu0 0
        %2205 = vmatpush2.bf16.msra.mxu0 0
        %2206 = vmatprep.subr.bf16.mxu0 0
        %2207 = vmatpush2.bf16.msra.mxu0 0
        %2208 = vmatprep.subr.bf16.mxu0 0
        %2209 = vmatpush2.bf16.msra.mxu0 0
        %2210 = vmatprep.subr.bf16.mxu0 0
        %2211 = vmatpush2.bf16.msra.mxu0 0
        %2212 = vmatprep.subr.bf16.mxu0 0
        %2213 = vmatpush2.bf16.msra.mxu0 0
        %2214 = vmatprep.subr.bf16.mxu0 0
        %2215 = vmatpush2.bf16.msra.mxu0 0
        %2216 = vmatprep.subr.bf16.mxu0 0
        %2217 = vmatpush2.bf16.msra.mxu0 0
        %2218 = vmatprep.mubr.bf16.mxu0 0
        %2219 = vmatmul.mubr.bf16.gmra.mxu0 %v928
        %v2220 = vpop.f32.mrf.mxu0
        %v2221 = vadd.f32 0.0, %v2220
        %v2222 = vpop.f32.mrf.mxu0
        %v2223 = vpop.f32.mrf.mxu0
        %v2224 = vadd.f32 0.0, %v2223
        %v2225 = vpop.f32.mrf.mxu0
        %2226 = vmatprep.mubr.bf16.mxu0 0
        %2227 = vmatmul.mubr.bf16.gmra.mxu0 %v931
        %v2228 = vpop.f32.mrf.mxu0
        %v2229 = vadd.f32 0.0, %v2228
        %v2230 = vpop.f32.mrf.mxu0
        %v2231 = vpop.f32.mrf.mxu0
        %v2232 = vadd.f32 0.0, %v2231
        %v2233 = vpop.f32.mrf.mxu0
        %2234 = vmatprep.mubr.bf16.mxu0 0
        %2235 = vmatmul.mubr.bf16.gmra.mxu0 %v934
        %v2236 = vpop.f32.mrf.mxu0
        %v2237 = vadd.f32 0.0, %v2236
        %v2238 = vpop.f32.mrf.mxu0
        %v2239 = vpop.f32.mrf.mxu0
        %v2240 = vadd.f32 0.0, %v2239
        %v2241 = vpop.f32.mrf.mxu0
        %2242 = vmatprep.mubr.bf16.mxu0 0
        %2243 = vmatmul.mubr.bf16.gmra.mxu0 %v937
        %v2244 = vpop.f32.mrf.mxu0
        %v2245 = vadd.f32 0.0, %v2244
        %v2246 = vpop.f32.mrf.mxu0
        %v2247 = vpop.f32.mrf.mxu0
        %v2248 = vadd.f32 0.0, %v2247
        %v2249 = vpop.f32.mrf.mxu0
        %2250 = vmatprep.mubr.bf16.mxu0 0
        %2251 = vmatmul.mubr.bf16.gmra.mxu0 %v940
        %v2252 = vpop.f32.mrf.mxu0
        %v2253 = vadd.f32 0.0, %v2252
        %v2254 = vpop.f32.mrf.mxu0
        %v2255 = vpop.f32.mrf.mxu0
        %v2256 = vadd.f32 0.0, %v2255
        %v2257 = vpop.f32.mrf.mxu0
        %2258 = vmatprep.mubr.bf16.mxu0 0
        %2259 = vmatmul.mubr.bf16.gmra.mxu0 %v943
        %v2260 = vpop.f32.mrf.mxu0
        %v2261 = vadd.f32 0.0, %v2260
        %v2262 = vpop.f32.mrf.mxu0
        %v2263 = vpop.f32.mrf.mxu0
        %v2264 = vadd.f32 0.0, %v2263
        %v2265 = vpop.f32.mrf.mxu0
        %2266 = vmatprep.mubr.bf16.mxu0 0
        %2267 = vmatmul.mubr.bf16.gmra.mxu0 %v946
        %v2268 = vpop.f32.mrf.mxu0
        %v2269 = vadd.f32 0.0, %v2268
        %v2270 = vpop.f32.mrf.mxu0
        %v2271 = vpop.f32.mrf.mxu0
        %v2272 = vadd.f32 0.0, %v2271
        %v2273 = vpop.f32.mrf.mxu0
        %2274 = vmatprep.mubr.bf16.mxu0 0
        %2275 = vmatmul.mubr.bf16.gmra.mxu0 %v949
        %v2276 = vpop.f32.mrf.mxu0
        %v2277 = vadd.f32 0.0, %v2276
        %v2278 = vpop.f32.mrf.mxu0
        %v2279 = vpop.f32.mrf.mxu0
        %v2280 = vadd.f32 0.0, %v2279
        %v2281 = vpop.f32.mrf.mxu0
        %2282 = vmatprep.mubr.bf16.mxu0 0
        %2283 = vmatmul.mubr.bf16.gmra.mxu0 %v952
        %v2284 = vpop.f32.mrf.mxu0
        %v2285 = vadd.f32 0.0, %v2284
        %v2286 = vpop.f32.mrf.mxu0
        %v2287 = vpop.f32.mrf.mxu0
        %v2288 = vadd.f32 0.0, %v2287
        %v2289 = vpop.f32.mrf.mxu0
        %2290 = vmatprep.mubr.bf16.mxu0 0
        %2291 = vmatmul.mubr.bf16.gmra.mxu0 %v955
        %v2292 = vpop.f32.mrf.mxu0
        %v2293 = vadd.f32 0.0, %v2292
        %v2294 = vpop.f32.mrf.mxu0
        %v2295 = vpop.f32.mrf.mxu0
        %v2296 = vadd.f32 0.0, %v2295
        %v2297 = vpop.f32.mrf.mxu0
        %2298 = vmatprep.mubr.bf16.mxu0 0
        %2299 = vmatmul.mubr.bf16.gmra.mxu0 %v958
        %v2300 = vpop.f32.mrf.mxu0
        %v2301 = vadd.f32 0.0, %v2300
        %v2302 = vpop.f32.mrf.mxu0
        %v2303 = vpop.f32.mrf.mxu0
        %v2304 = vadd.f32 0.0, %v2303
        %v2305 = vpop.f32.mrf.mxu0
        %2306 = vmatprep.mubr.bf16.mxu0 0
        %2307 = vmatmul.mubr.bf16.gmra.mxu0 %v961
        %v2308 = vpop.f32.mrf.mxu0
        %v2309 = vadd.f32 0.0, %v2308
        %v2310 = vpop.f32.mrf.mxu0
        %v2311 = vpop.f32.mrf.mxu0
        %v2312 = vadd.f32 0.0, %v2311
        %v2313 = vpop.f32.mrf.mxu0
        %2314 = vmatprep.mubr.bf16.mxu0 0
        %2315 = vmatmul.mubr.bf16.gmra.mxu0 %v964
        %v2316 = vpop.f32.mrf.mxu0
        %v2317 = vadd.f32 0.0, %v2316
        %v2318 = vpop.f32.mrf.mxu0
        %v2319 = vpop.f32.mrf.mxu0
        %v2320 = vadd.f32 0.0, %v2319
        %v2321 = vpop.f32.mrf.mxu0
        %2322 = vmatprep.mubr.bf16.mxu0 0
        %2323 = vmatmul.mubr.bf16.gmra.mxu0 %v967
        %v2324 = vpop.f32.mrf.mxu0
        %v2325 = vadd.f32 0.0, %v2324
        %v2326 = vpop.f32.mrf.mxu0
        %v2327 = vpop.f32.mrf.mxu0
        %v2328 = vadd.f32 0.0, %v2327
        %v2329 = vpop.f32.mrf.mxu0
        %2330 = vmatprep.mubr.bf16.mxu0 0
        %2331 = vmatmul.mubr.bf16.gmra.mxu0 %v1574
        %v2332 = vpop.f32.mrf.mxu0
        %v2333 = vadd.f32 0.0, %v2332
        %v2334 = vpop.f32.mrf.mxu0
        %v2335 = vpop.f32.mrf.mxu0
        %v2336 = vadd.f32 0.0, %v2335
        %v2337 = vpop.f32.mrf.mxu0
        %2338 = vmatprep.mubr.bf16.mxu0 0
        %2339 = vmatmul.mubr.bf16.gmra.mxu0 %v2181
        %v2340 = vpop.f32.mrf.mxu0
        %v2341 = vadd.f32 0.0, %v2340
        %v2342 = vpop.f32.mrf.mxu0
        %v2343 = vpop.f32.mrf.mxu0
        %v2344 = vadd.f32 0.0, %v2343
        %v2345 = vpop.f32.mrf.mxu0
        %2346 = vdwg.mxu0
        %v2347 = vadd.f32 %v2145, %v2221
        %v2348 = vadd.f32 %v2146, %v2224
        %v2349 = vadd.f32 %v2147, %v2229
        %v2350 = vadd.f32 %v2148, %v2232
        %v2351 = vadd.f32 %v2149, %v2237
        %v2352 = vadd.f32 %v2150, %v2240
        %v2353 = vadd.f32 %v2151, %v2245
        %v2354 = vadd.f32 %v2152, %v2248
        %v2355 = vadd.f32 %v2153, %v2253
        %v2356 = vadd.f32 %v2154, %v2256
        %v2357 = vadd.f32 %v2155, %v2261
        %v2358 = vadd.f32 %v2156, %v2264
        %v2359 = vadd.f32 %v2157, %v2269
        %v2360 = vadd.f32 %v2158, %v2272
        %v2361 = vadd.f32 %v2159, %v2277
        %v2362 = vadd.f32 %v2160, %v2280
        %v2363 = vadd.f32 %v2161, %v2285
        %v2364 = vadd.f32 %v2162, %v2288
        %v2365 = vadd.f32 %v2163, %v2293
        %v2366 = vadd.f32 %v2164, %v2296
        %v2367 = vadd.f32 %v2165, %v2301
        %v2368 = vadd.f32 %v2166, %v2304
        %v2369 = vadd.f32 %v2167, %v2309
        %v2370 = vadd.f32 %v2168, %v2312
        %v2371 = vadd.f32 %v2169, %v2317
        %v2372 = vadd.f32 %v2170, %v2320
        %v2373 = vadd.f32 %v2171, %v2325
        %v2374 = vadd.f32 %v2172, %v2328
        %v2375 = vadd.f32 %v2173, %v2333
        %v2376 = vadd.f32 %v2174, %v2336
        %v2377 = vadd.f32 %v2175, %v2341
        %v2378 = vadd.f32 %v2176, %v2344
        %v2379 = vld [vmem:[%s2] sm:$0x1]
        %v2381 = vlaneseq
        %v2382 = vshrl.u32 %v2381, 7
        %v2383 = vsub.s32 0, %v2382
        %v2384 = vrot.slane %v2379, %v2383
        %v2386 = vadd.f32 %v2347, %v2384
        %v2387 = vadd.f32 %v2348, %v2384
        %v2388 = vadd.f32 %v2349, %v2384
        %v2389 = vadd.f32 %v2350, %v2384
        %v2390 = vadd.f32 %v2351, %v2384
        %v2391 = vadd.f32 %v2352, %v2384
        %v2392 = vadd.f32 %v2353, %v2384
        %v2393 = vadd.f32 %v2354, %v2384
        %v2394 = vadd.f32 %v2355, %v2384
        %v2395 = vadd.f32 %v2356, %v2384
        %v2396 = vadd.f32 %v2357, %v2384
        %v2397 = vadd.f32 %v2358, %v2384
        %v2398 = vadd.f32 %v2359, %v2384
        %v2399 = vadd.f32 %v2360, %v2384
        %v2400 = vadd.f32 %v2361, %v2384
        %v2401 = vadd.f32 %v2362, %v2384
        %v2402 = vadd.f32 %v2363, %v2384
        %v2403 = vadd.f32 %v2364, %v2384
        %v2404 = vadd.f32 %v2365, %v2384
        %v2405 = vadd.f32 %v2366, %v2384
        %v2406 = vadd.f32 %v2367, %v2384
        %v2407 = vadd.f32 %v2368, %v2384
        %v2408 = vadd.f32 %v2369, %v2384
        %v2409 = vadd.f32 %v2370, %v2384
        %v2410 = vadd.f32 %v2371, %v2384
        %v2411 = vadd.f32 %v2372, %v2384
        %v2412 = vadd.f32 %v2373, %v2384
        %v2413 = vadd.f32 %v2374, %v2384
        %v2414 = vadd.f32 %v2375, %v2384
        %v2415 = vadd.f32 %v2376, %v2384
        %v2416 = vadd.f32 %v2377, %v2384
        %v2417 = vadd.f32 %v2378, %v2384
        %v2418 = vmax.f32 %v2386, 0.0
        %v2419 = vmax.f32 %v2387, 0.0
        %v2420 = vmax.f32 %v2388, 0.0
        %v2421 = vmax.f32 %v2389, 0.0
        %v2422 = vmax.f32 %v2390, 0.0
        %v2423 = vmax.f32 %v2391, 0.0
        %v2424 = vmax.f32 %v2392, 0.0
        %v2425 = vmax.f32 %v2393, 0.0
        %v2426 = vmax.f32 %v2394, 0.0
        %v2427 = vmax.f32 %v2395, 0.0
        %v2428 = vmax.f32 %v2396, 0.0
        %v2429 = vmax.f32 %v2397, 0.0
        %v2430 = vmax.f32 %v2398, 0.0
        %v2431 = vmax.f32 %v2399, 0.0
        %v2432 = vmax.f32 %v2400, 0.0
        %v2433 = vmax.f32 %v2401, 0.0
        %v2434 = vmax.f32 %v2402, 0.0
        %v2435 = vmax.f32 %v2403, 0.0
        %v2436 = vmax.f32 %v2404, 0.0
        %v2437 = vmax.f32 %v2405, 0.0
        %v2438 = vmax.f32 %v2406, 0.0
        %v2439 = vmax.f32 %v2407, 0.0
        %v2440 = vmax.f32 %v2408, 0.0
        %v2441 = vmax.f32 %v2409, 0.0
        %v2442 = vmax.f32 %v2410, 0.0
        %v2443 = vmax.f32 %v2411, 0.0
        %v2444 = vmax.f32 %v2412, 0.0
        %v2445 = vmax.f32 %v2413, 0.0
        %v2446 = vmax.f32 %v2414, 0.0
        %v2447 = vmax.f32 %v2415, 0.0
        %v2448 = vmax.f32 %v2416, 0.0
        %v2449 = vmax.f32 %v2417, 0.0
        %v2450 = vld [vmem:[%s3] sm:$0x3]
        %v2452 = vlaneseq
        %v2453 = vshrl.u32 %v2452, 7
        %v2454 = vsub.s32 0, %v2453
        %v2455 = vrot.slane %v2450, %v2454
        %v2456 = vlaneseq
        %v2457 = vshrl.u32 %v2456, 7
        %v2458 = vsub.s32 1, %v2457
        %v2459 = vrot.slane %v2450, %v2458
        %2462 = vmatprep.subr.mxu0 0.0
        %2463 = vmatpush1.msra.mxu0 %v2433
        %2464 = vmatprep.subr.mxu0 0.0
        %2465 = vmatpush1.msra.mxu0 %v2432
        %2466 = vmatprep.subr.mxu0 0.0
        %2467 = vmatpush1.msra.mxu0 %v2431
        %2468 = vmatprep.subr.mxu0 0.0
        %2469 = vmatpush1.msra.mxu0 %v2430
        %2470 = vmatprep.subr.mxu0 0.0
        %2471 = vmatpush1.msra.mxu0 %v2429
        %2472 = vmatprep.subr.mxu0 0.0
        %2473 = vmatpush1.msra.mxu0 %v2428
        %2474 = vmatprep.subr.mxu0 0.0
        %2475 = vmatpush1.msra.mxu0 %v2427
        %2476 = vmatprep.subr.mxu0 0.0
        %2477 = vmatpush1.msra.mxu0 %v2426
        %2478 = vmatprep.subr.mxu0 0.0
        %2479 = vmatpush1.msra.mxu0 %v2425
        %2480 = vmatprep.subr.mxu0 0.0
        %2481 = vmatpush1.msra.mxu0 %v2424
        %2482 = vmatprep.subr.mxu0 0.0
        %2483 = vmatpush1.msra.mxu0 %v2423
        %2484 = vmatprep.subr.mxu0 0.0
        %2485 = vmatpush1.msra.mxu0 %v2422
        %2486 = vmatprep.subr.mxu0 0.0
        %2487 = vmatpush1.msra.mxu0 %v2421
        %2488 = vmatprep.subr.mxu0 0.0
        %2489 = vmatpush1.msra.mxu0 %v2420
        %2490 = vmatprep.subr.mxu0 0.0
        %2491 = vmatpush1.msra.mxu0 %v2419
        %2492 = vmatprep.subr.mxu0 0.0
        %2493 = vmatpush1.msra.mxu0 %v2418
        %2494 = vmatprep.subr.mxu0 0.0
        %2495 = vmatpush2.msra.mxu0 %v2449
        %2496 = vmatprep.subr.mxu0 0.0
        %2497 = vmatpush2.msra.mxu0 %v2448
        %2498 = vmatprep.subr.mxu0 0.0
        %2499 = vmatpush2.msra.mxu0 %v2447
        %2500 = vmatprep.subr.mxu0 0.0
        %2501 = vmatpush2.msra.mxu0 %v2446
        %2502 = vmatprep.subr.mxu0 0.0
        %2503 = vmatpush2.msra.mxu0 %v2445
        %2504 = vmatprep.subr.mxu0 0.0
        %2505 = vmatpush2.msra.mxu0 %v2444
        %2506 = vmatprep.subr.mxu0 0.0
        %2507 = vmatpush2.msra.mxu0 %v2443
        %2508 = vmatprep.subr.mxu0 0.0
        %2509 = vmatpush2.msra.mxu0 %v2442
        %2510 = vmatprep.subr.mxu0 0.0
        %2511 = vmatpush2.msra.mxu0 %v2441
        %2512 = vmatprep.subr.mxu0 0.0
        %2513 = vmatpush2.msra.mxu0 %v2440
        %2514 = vmatprep.subr.mxu0 0.0
        %2515 = vmatpush2.msra.mxu0 %v2439
        %2516 = vmatprep.subr.mxu0 0.0
        %2517 = vmatpush2.msra.mxu0 %v2438
        %2518 = vmatprep.subr.mxu0 0.0
        %2519 = vmatpush2.msra.mxu0 %v2437
        %2520 = vmatprep.subr.mxu0 0.0
        %2521 = vmatpush2.msra.mxu0 %v2436
        %2522 = vmatprep.subr.mxu0 0.0
        %2523 = vmatpush2.msra.mxu0 %v2435
        %2524 = vmatprep.subr.mxu0 0.0
        %2525 = vmatpush2.msra.mxu0 %v2434
        %2526 = vmatprep.mubr.f32.mxu0 %v2459
        %2527 = vmatmul.mubr.f32.gmra.mxu0 %v2455
        %v2528 = vpop.f32.mrf.mxu0
        %v2529 = vadd.f32 0.0, %v2528
        %v2530 = vpop.f32.mrf.mxu0
        %2531 = vdwg.mxu0
        %v2532 = vld [vmem:[%s4] sm:$0xff]
        %v2533 = vld [vmem:[%s4 + $0x8] sm:$0xff]
        %v2534 = vld [vmem:[%s4 + $0x10] sm:$0xff]
        %v2535 = vld [vmem:[%s4 + $0x18] sm:$0xff]
        %v2536 = vld [vmem:[%s4 + $0x20] sm:$0xff]
        %v2537 = vld [vmem:[%s4 + $0x28] sm:$0xff]
        %v2538 = vld [vmem:[%s4 + $0x30] sm:$0xff]
        %v2539 = vld [vmem:[%s4 + $0x38] sm:$0xff]
        %v2540 = vld [vmem:[%s5] sm:$0x1]
        %vm2541 = vcmask 523264
        %v2543 = vsel %vm2541, %v2529, 0
        %2545 = vmatprep.subr.mxu0 0.0
        %2546 = vmatpush1.msra.mxu0 0.0
        %2547 = vmatprep.subr.mxu0 0.0
        %2548 = vmatpush1.msra.mxu0 0.0
        %2549 = vmatprep.subr.mxu0 0.0
        %2550 = vmatpush1.msra.mxu0 0.0
        %2551 = vmatprep.subr.mxu0 0.0
        %2552 = vmatpush1.msra.mxu0 0.0
        %2553 = vmatprep.subr.mxu0 0.0
        %2554 = vmatpush1.msra.mxu0 0.0
        %2555 = vmatprep.subr.mxu0 0.0
        %2556 = vmatpush1.msra.mxu0 0.0
        %2557 = vmatprep.subr.mxu0 0.0
        %2558 = vmatpush1.msra.mxu0 0.0
        %2559 = vmatprep.subr.mxu0 0.0
        %2560 = vmatpush1.msra.mxu0 0.0
        %2561 = vmatprep.subr.mxu0 0.0
        %2562 = vmatpush1.msra.mxu0 %v2539
        %2563 = vmatprep.subr.mxu0 0.0
        %2564 = vmatpush1.msra.mxu0 %v2538
        %2565 = vmatprep.subr.mxu0 0.0
        %2566 = vmatpush1.msra.mxu0 %v2537
        %2567 = vmatprep.subr.mxu0 0.0
        %2568 = vmatpush1.msra.mxu0 %v2536
        %2569 = vmatprep.subr.mxu0 0.0
        %2570 = vmatpush1.msra.mxu0 %v2535
        %2571 = vmatprep.subr.mxu0 0.0
        %2572 = vmatpush1.msra.mxu0 %v2534
        %2573 = vmatprep.subr.mxu0 0.0
        %2574 = vmatpush1.msra.mxu0 %v2533
        %2575 = vmatprep.subr.mxu0 0.0
        %2576 = vmatpush1.msra.mxu0 %v2532
        %2577 = vmatprep.subr.mxu0 0.0
        %2578 = vmatpush2.msra.mxu0 0.0
        %2579 = vmatprep.subr.mxu0 0.0
        %2580 = vmatpush2.msra.mxu0 0.0
        %2581 = vmatprep.subr.mxu0 0.0
        %2582 = vmatpush2.msra.mxu0 0.0
        %2583 = vmatprep.subr.mxu0 0.0
        %2584 = vmatpush2.msra.mxu0 0.0
        %2585 = vmatprep.subr.mxu0 0.0
        %2586 = vmatpush2.msra.mxu0 0.0
        %2587 = vmatprep.subr.mxu0 0.0
        %2588 = vmatpush2.msra.mxu0 0.0
        %2589 = vmatprep.subr.mxu0 0.0
        %2590 = vmatpush2.msra.mxu0 0.0
        %2591 = vmatprep.subr.mxu0 0.0
        %2592 = vmatpush2.msra.mxu0 0.0
        %2593 = vmatprep.subr.mxu0 0.0
        %2594 = vmatpush2.msra.mxu0 0.0
        %2595 = vmatprep.subr.mxu0 0.0
        %2596 = vmatpush2.msra.mxu0 0.0
        %2597 = vmatprep.subr.mxu0 0.0
        %2598 = vmatpush2.msra.mxu0 0.0
        %2599 = vmatprep.subr.mxu0 0.0
        %2600 = vmatpush2.msra.mxu0 0.0
        %2601 = vmatprep.subr.mxu0 0.0
        %2602 = vmatpush2.msra.mxu0 0.0
        %2603 = vmatprep.subr.mxu0 0.0
        %2604 = vmatpush2.msra.mxu0 0.0
        %2605 = vmatprep.subr.mxu0 0.0
        %2606 = vmatpush2.msra.mxu0 0.0
        %2607 = vmatprep.subr.mxu0 0.0
        %2608 = vmatpush2.msra.mxu0 0.0
        %2609 = vmatprep.mubr.f32.mxu0 0.0
        %2610 = vmatmul.mubr.f32.gmra.mxu0 %v2543
        %v2611 = vpop.f32.mrf.mxu0
        %v2612 = vadd.f32 %v2540, %v2611
        %v2613 = vpop.f32.mrf.mxu0
        %2614 = vdwg.mxu0
        %2615 = vst [vmem:[%s243] sm:$0x1] %v2612
        %s2616 = sand.u32 %s159, 1
        %s2617 = scalar_lea.sflag [#allocation3], %s2616
        %s2618 = sand.u32 %s159, 1
        %s2619 = scalar_lea.vmem [#allocation2], %s2618
        // Predicated region
        $region45: #{model_forward.1} parent=43 // pred_check
          %p2620 = pneg %p169
        $region46: #{model_forward.1} parent=43 // pred_check_branch
          %2622 = sbr.rel (%p2620) target = $region48
        $region47: #{model_forward.1} parent=43 // pred_region
          %s2624 = ssub.s32 16, 16
          %2625 = vsyncadd %s2617, %s2624
          %s2626 = smul.addr %s20, 16
          %s2627 = scalar_lea.hbm %s6, %s2626
          %s2629 = sshll.u32 %s2619, 4
          %s2630 = int_to_ptr.vmem [resolvable:$true] %s2629
          %2632 = dma.vmem_to_hbm [thread:$0]  %s2630, 16, %s2627, %s2617
        $region48: #{model_forward.1} parent=43 // pred_fallthru
          _
      $region44: #{model_forward.1} parent=5 // pred_fallthru
        _
      %p2633 = scmp.le.s32.totalorder 2, %s15
      // Predicated region
      $region49: #{model_forward.1} parent=5 // pred_check
        %p2634 = pneg %p2633
      $region50: #{model_forward.1} parent=5 // pred_check_branch
        %2636 = sbr.rel (%p2634) target = $region52
      $region51: #{model_forward.1} parent=5 // pred_region
        %s2637 = ssub.s32 %s15, 2
        // Predicated region
        $region53: #{model_forward.1} parent=51 // pred_check
          %p2638 = pneg %p175
        $region54: #{model_forward.1} parent=51 // pred_check_branch
          %2640 = sbr.rel (%p2638) target = $region56
        $region55: #{model_forward.1} parent=51 // pred_region
          %s2641 = sand.u32 %s160, 1
          %s2642 = scalar_lea.sflag [#allocation3], %s2641
          %s2643 = sand.u32 %s160, 1
          %s2644 = scalar_lea.vmem [#allocation2], %s2643
          %2645 = dma.done %s2642, 16
        $region56: #{model_forward.1} parent=51 // pred_fallthru
          _
      $region52: #{model_forward.1} parent=5 // pred_fallthru
        _
    $region6: #{model_forward.1} parent=1 // loop_footer
      %s19 = sadd.s32 1, %s15
    $region7: #{model_forward.1} parent=1 // loop_footer_branch
      %14 = sbr.rel target = $region3
    $region8: #{model_forward.1} parent=1 // loop_exit
      _
    %2646 = vsyncpa [#allocation3], 1
    %s2647 = scalar_lea.sflag [#allocation3], 1
    %2648 = vsyncpa %s2647, 1

</llo_original>
